<compile_context>
chip_gen: v5e
topology: v5e:2x2
jax: 0.10.0
libtpu: 0.0.40
codegen_flags: <defaults>
</compile_context>

<pallas_src>
import functools

import jax
import jax.numpy as jnp
from jax.experimental import pallas as pl
from jax.experimental.pallas import tpu as pltpu

_VMEM_LIMIT = 32 * 1024 * 1024   # safe on v5e/v6e (128 MiB) and v7x (64 MiB)


def _tile(dim, target):
    """Largest divisor of `dim` that is <= target (dim itself if it fits)."""
    if dim <= target:
        return dim
    t = target
    while dim % t:
        t //= 2
    return max(t, 1)


def _gelu_tanh(x):
    # tanh-approx GELU (EUP-friendly).  HF BERT's default hidden_act is the
    # erf-based GELU; the synthetic model here uses the tanh form.
    return 0.5 * x * (1.0 + jnp.tanh(0.7978845608028654 * (x + 0.044715 * x * x * x)))


# ------------------------- tiled linear (+epilogues) ------------------------

def _linear_kernel(x_ref, w_ref, b_ref, o_ref, acc_ref, *, activation):
    k = pl.program_id(2)

    @pl.when(k == 0)
    def _():
        acc_ref[...] = jnp.zeros_like(acc_ref)

    acc_ref[...] += jnp.dot(x_ref[...], w_ref[...],
                            preferred_element_type=jnp.float32)

    @pl.when(k == pl.num_programs(2) - 1)
    def _():
        y = acc_ref[...] + b_ref[...]            # bias only at finalize
        if activation == "gelu":
            y = _gelu_tanh(y)
        elif activation == "tanh":
            y = jnp.tanh(y)
        o_ref[...] = y


def pallas_linear(x, w, b, activation=None, *, tm=256, tn=512, tk=512):
    """y = act(x @ w + b).  x:[M,K] (any float), w:[K,N] bf16, b:[1,N] f32."""
    M, K = x.shape
    N = w.shape[1]
    tm, tn, tk = _tile(M, tm), _tile(N, tn), _tile(K, tk)
    grid = (M // tm, N // tn, K // tk)
    return pl.pallas_call(
        functools.partial(_linear_kernel, activation=activation),
        out_shape=jax.ShapeDtypeStruct((M, N), jnp.float32),
        grid_spec=pltpu.PrefetchScalarGridSpec(
            num_scalar_prefetch=0,
            grid=grid,
            in_specs=[
                pl.BlockSpec((tm, tk), lambda i, j, k: (i, k)),
                pl.BlockSpec((tk, tn), lambda i, j, k: (k, j)),  # no i dependence
                pl.BlockSpec((1, tn), lambda i, j, k: (0, j)),
            ],
            out_specs=pl.BlockSpec((tm, tn), lambda i, j, k: (i, j)),
            scratch_shapes=[pltpu.VMEM((tm, tn), jnp.float32)],
        ),
        compiler_params=pltpu.CompilerParams(
            dimension_semantics=("parallel", "parallel", "arbitrary"),
            vmem_limit_bytes=_VMEM_LIMIT),
    )(x.astype(jnp.bfloat16), w, b)


def _linear_ln_kernel(x_ref, w_ref, b_ref, res_ref, g_ref, bt_ref,
                      o_ref, acc_ref, *, eps):
    k = pl.program_id(2)

    @pl.when(k == 0)
    def _():
        acc_ref[...] = jnp.zeros_like(acc_ref)

    acc_ref[...] += jnp.dot(x_ref[...], w_ref[...],
                            preferred_element_type=jnp.float32)

    @pl.when(k == pl.num_programs(2) - 1)
    def _():
        h = acc_ref[...] + b_ref[...] + res_ref[...]
        mean = jnp.mean(h, axis=-1, keepdims=True)
        cent = h - mean
        var = jnp.mean(cent * cent, axis=-1, keepdims=True)
        o_ref[...] = cent * jax.lax.rsqrt(var + eps) * g_ref[...] + bt_ref[...]


def pallas_linear_add_layernorm(x, w, b, residual, gamma, beta,
                                eps=1e-12, *, tm=256, tk=512):
    """LayerNorm(x @ w + b + residual).  N (hidden) kept whole for the LN reduce."""
    M, K = x.shape
    N = w.shape[1]
    tm, tk = _tile(M, tm), _tile(K, tk)
    grid = (M // tm, 1, K // tk)
    return pl.pallas_call(
        functools.partial(_linear_ln_kernel, eps=eps),
        out_shape=jax.ShapeDtypeStruct((M, N), jnp.float32),
        grid_spec=pltpu.PrefetchScalarGridSpec(
            num_scalar_prefetch=0,
            grid=grid,
            in_specs=[
                pl.BlockSpec((tm, tk), lambda i, j, k: (i, k)),
                pl.BlockSpec((tk, N), lambda i, j, k: (k, 0)),
                pl.BlockSpec((1, N), lambda i, j, k: (0, 0)),
                pl.BlockSpec((tm, N), lambda i, j, k: (i, 0)),
                pl.BlockSpec((1, N), lambda i, j, k: (0, 0)),
                pl.BlockSpec((1, N), lambda i, j, k: (0, 0)),
            ],
            out_specs=pl.BlockSpec((tm, N), lambda i, j, k: (i, 0)),
            scratch_shapes=[pltpu.VMEM((tm, N), jnp.float32)],
        ),
        compiler_params=pltpu.CompilerParams(
            dimension_semantics=("parallel", "parallel", "arbitrary"),
            vmem_limit_bytes=_VMEM_LIMIT),
    )(x.astype(jnp.bfloat16), w, b, residual, gamma, beta)


# --------------------------- plain LayerNorm (emb) ---------------------------

def _ln_kernel(x_ref, g_ref, b_ref, o_ref, *, eps):
    h = x_ref[...]
    mean = jnp.mean(h, axis=-1, keepdims=True)
    cent = h - mean
    var = jnp.mean(cent * cent, axis=-1, keepdims=True)
    o_ref[...] = cent * jax.lax.rsqrt(var + eps) * g_ref[...] + b_ref[...]


def pallas_layernorm(x, gamma, beta, eps=1e-12, *, tm=512):
    M, H = x.shape
    tm = _tile(M, tm)
    return pl.pallas_call(
        functools.partial(_ln_kernel, eps=eps),
        out_shape=jax.ShapeDtypeStruct((M, H), jnp.float32),
        grid=(M // tm,),
        in_specs=[
            pl.BlockSpec((tm, H), lambda i: (i, 0)),
            pl.BlockSpec((1, H), lambda i: (0, 0)),
            pl.BlockSpec((1, H), lambda i: (0, 0)),
        ],
        out_specs=pl.BlockSpec((tm, H), lambda i: (i, 0)),
        compiler_params=pltpu.CompilerParams(
            dimension_semantics=("parallel",),
            vmem_limit_bytes=_VMEM_LIMIT),
    )(x, gamma, beta)


# -------------------------------- attention ---------------------------------

def _attn_kernel(qkv_ref, bias_ref, o_ref, *, n_heads, dh, scale):
    H = n_heads * dh
    qkv = qkv_ref[0]            # [S, 3H] bf16
    bias = bias_ref[0]          # [1, S] f32 additive mask bias
    heads = []
    for hh in range(n_heads):   # static unroll; heads stay VMEM/lane resident
        q = qkv[:, hh * dh:(hh + 1) * dh] * scale          # fold 1/sqrt(dh) into q
        k = qkv[:, H + hh * dh:H + (hh + 1) * dh]
        v = qkv[:, 2 * H + hh * dh:2 * H + (hh + 1) * dh]
        # q @ k.T without materializing a transpose.
        s = jax.lax.dot_general(q, k, (((1,), (1,)), ((), ())),
                                preferred_element_type=jnp.float32) + bias
        s = s - jnp.max(s, axis=-1, keepdims=True)
        p = jnp.exp(s)
        inv = pl.reciprocal(jnp.sum(p, axis=-1, keepdims=True), approx=True)
        ctx = jnp.dot(p.astype(jnp.bfloat16), v,
                      preferred_element_type=jnp.float32) * inv
        heads.append(ctx)
    o_ref[0] = jnp.concatenate(heads, axis=-1)   # single lane-dense [S, H] store


def pallas_attention(qkv, mask_bias, n_heads):
    """qkv: [B, S, 3H] bf16, mask_bias: [B, 1, S] f32 -> [B, S, H] f32."""
    B, S, threeH = qkv.shape
    H = threeH // 3
    dh = H // n_heads
    return pl.pallas_call(
        functools.partial(_attn_kernel, n_heads=n_heads, dh=dh,
                          scale=1.0 / (dh ** 0.5)),
        out_shape=jax.ShapeDtypeStruct((B, S, H), jnp.float32),
        grid=(B,),
        in_specs=[
            pl.BlockSpec((1, S, threeH), lambda b: (b, 0, 0)),
            pl.BlockSpec((1, 1, S), lambda b: (b, 0, 0)),
        ],
        out_specs=pl.BlockSpec((1, S, H), lambda b: (b, 0, 0)),
        compiler_params=pltpu.CompilerParams(
            dimension_semantics=("parallel",),
            vmem_limit_bytes=_VMEM_LIMIT),
    )(qkv, mask_bias)


# ------------------------------ synthetic BERT ------------------------------

def init_params(key, vocab, max_pos, type_vocab, hidden, n_heads, inter, n_layers):
    def normal(k, shape, dtype=jnp.float32):
        return (0.02 * jax.random.normal(k, shape, jnp.float32)).astype(dtype)

    bf16 = jnp.bfloat16
    keys = iter(jax.random.split(key, 8 + n_layers * 8))
    p = {
        "word_emb": normal(next(keys), (vocab, hidden)),
        "pos_emb": normal(next(keys), (max_pos, hidden)),
        "type_emb": normal(next(keys), (type_vocab, hidden)),
        "emb_ln_g": jnp.ones((1, hidden), jnp.float32),
        "emb_ln_b": jnp.zeros((1, hidden), jnp.float32),
        "pool_w": normal(next(keys), (hidden, hidden), bf16),
        "pool_b": jnp.zeros((1, hidden), jnp.float32),
        "layers": [],
    }
    for _ in range(n_layers):
        wq = normal(next(keys), (hidden, hidden))
        wk = normal(next(keys), (hidden, hidden))
        wv = normal(next(keys), (hidden, hidden))
        layer = {
            # Q/K/V fused into one [H, 3H] matmul: one HBM pass over h per layer.
            "wqkv": jnp.concatenate([wq, wk, wv], axis=1).astype(bf16),
            "bqkv": jnp.zeros((1, 3 * hidden), jnp.float32),
            "wo": normal(next(keys), (hidden, hidden), bf16),
            "bo": jnp.zeros((1, hidden), jnp.float32),
            "ln1_g": jnp.ones((1, hidden), jnp.float32),
            "ln1_b": jnp.zeros((1, hidden), jnp.float32),
            "wi": normal(next(keys), (hidden, inter), bf16),
            "bi": jnp.zeros((1, inter), jnp.float32),
            "wf": normal(next(keys), (inter, hidden), bf16),
            "bf": jnp.zeros((1, hidden), jnp.float32),
            "ln2_g": jnp.ones((1, hidden), jnp.float32),
            "ln2_b": jnp.zeros((1, hidden), jnp.float32),
        }
        p["layers"].append(layer)
    return p


def bert_forward(params, input_ids, attention_mask, token_type_ids, n_heads):
    B, S = input_ids.shape
    H = params["word_emb"].shape[1]

    # Embedding gathers stay in plain JAX (glue); LayerNorm in Pallas
    # (residual-free path: no zero-array DMA).
    emb = (params["word_emb"][input_ids]
           + params["pos_emb"][jnp.arange(S)][None, :, :]
           + params["type_emb"][token_type_ids])
    h = pallas_layernorm(emb.reshape(B * S, H),
                         params["emb_ln_g"], params["emb_ln_b"])

    # Classic BERT extended attention mask: (1 - mask) * -10000, additive.  [B,1,S]
    mask_bias = (1.0 - attention_mask.astype(jnp.float32))[:, None, :] * -10000.0

    for layer in params["layers"]:
        # Fused QKV projection: [B*S, 3H].
        qkv = pallas_linear(h, layer["wqkv"], layer["bqkv"])
        ctx = pallas_attention(qkv.astype(jnp.bfloat16).reshape(B, S, 3 * H),
                               mask_bias, n_heads)                    # [B, S, H]
        # Output projection fused with residual + LayerNorm.
        h = pallas_linear_add_layernorm(ctx.reshape(B * S, H),
                                        layer["wo"], layer["bo"], h,
                                        layer["ln1_g"], layer["ln1_b"])
        # FFN: up-proj + GELU, then down-proj fused with residual + LayerNorm.
        inter = pallas_linear(h, layer["wi"], layer["bi"], activation="gelu")
        h = pallas_linear_add_layernorm(inter, layer["wf"], layer["bf"], h,
                                        layer["ln2_g"], layer["ln2_b"])

    cls = h.reshape(B, S, H)[:, 0, :]                                  # [B, H]
    pooled = pallas_linear(cls, params["pool_w"], params["pool_b"],
                           activation="tanh")
    return pooled


def bert_feature_wrapper(params, x, n_heads):
    """Mirrors BertFeatureWrapper.forward.  x: [B, S, 2 or 3] int32."""
    input_ids = x[:, :, 0]
    attention_mask = x[:, :, 1]
    if x.shape[-1] == 3:
        token_type_ids = x[:, :, 2]
    else:
        token_type_ids = jnp.zeros_like(input_ids)
    pooler_output = bert_forward(params, input_ids, attention_mask,
                                 token_type_ids, n_heads)
    # nn.Dropout(0.0) is the identity.
    return pooler_output


# ---------------------------------- main -----------------------------------

if __name__ == "__main__":
    B, S, H, NH, INTER = 2, 8, 32, 2, 64
    VOCAB, MAX_POS, TYPE_VOCAB, N_LAYERS = 100, 64, 2, 2

    key = jax.random.PRNGKey(0)
    k_ids, k_params = jax.random.split(key)

    input_ids = jax.random.randint(k_ids, (B, S), 0, VOCAB, dtype=jnp.int32)
    attention_mask = jnp.ones((B, S), jnp.int32).at[1, -2:].set(0)  # pad last 2 of batch 1
    token_type_ids = jnp.zeros((B, S), jnp.int32).at[:, S // 2:].set(1)
    x = jnp.stack([input_ids, attention_mask, token_type_ids], axis=-1)  # [B, S, 3]

    params = init_params(k_params, VOCAB, MAX_POS, TYPE_VOCAB, H, NH, INTER, N_LAYERS)

    fwd = jax.jit(lambda xx: bert_feature_wrapper(params, xx, NH))
    out = jax.block_until_ready(fwd(x))                      # [B, H] pooler output
    assert out.shape == (B, H) and out.dtype == jnp.float32
    print("KERNEL_OK")
</pallas_src>

<mosaic_0001>
module attributes {stable_mosaic.version = 11 : i64} {
  func.func @_ln_kernel(%arg0: i32, %arg1: memref<16x32xf32, #tpu.memory_space<vmem>>, %arg2: memref<1x32xf32, #tpu.memory_space<vmem>>, %arg3: memref<1x32xf32, #tpu.memory_space<vmem>>, %arg4: memref<16x32xf32, #tpu.memory_space<vmem>>) attributes {dimension_semantics = [#tpu.dimension_semantics<parallel>], iteration_bounds = array<i64: 1>, scalar_prefetch = 0 : i64, scratch_operands = 0 : i64, tpu.core_type = #tpu.core_type<tc>, window_params = [{transform_indices = @transform_0, window_bounds = array<i64: 16, 32>}, {pipeline_mode = #tpu.pipeline_mode<synchronous>, transform_indices = @transform_1, window_bounds = array<i64: 1, 32>}, {pipeline_mode = #tpu.pipeline_mode<synchronous>, transform_indices = @transform_2, window_bounds = array<i64: 1, 32>}, {transform_indices = @transform_3, window_bounds = array<i64: 16, 32>}]} {
    %c0 = arith.constant 0 : index
    %c0_0 = arith.constant 0 : index
    %0 = vector.load %arg1[%c0, %c0_0] : memref<16x32xf32, #tpu.memory_space<vmem>>, vector<16x32xf32>
    %cst = arith.constant dense<0.000000e+00> : vector<16xf32>
    %1 = vector.multi_reduction <add>, %0, %cst [1] : vector<16x32xf32> to vector<16xf32>
    %2 = vector.shape_cast %1 : vector<16xf32> to vector<16x1xf32>
    %cst_1 = arith.constant 3.200000e+01 : f32
    %3 = vector.broadcast %cst_1 : f32 to vector<16x1xf32>
    %4 = arith.divf %2, %3 : vector<16x1xf32>
    %5 = vector.broadcast %4 : vector<16x1xf32> to vector<16x32xf32>
    %6 = arith.subf %0, %5 : vector<16x32xf32>
    %7 = arith.mulf %6, %6 : vector<16x32xf32>
    %cst_2 = arith.constant dense<0.000000e+00> : vector<16xf32>
    %8 = vector.multi_reduction <add>, %7, %cst_2 [1] : vector<16x32xf32> to vector<16xf32>
    %9 = vector.shape_cast %8 : vector<16xf32> to vector<16x1xf32>
    %cst_3 = arith.constant 3.200000e+01 : f32
    %10 = vector.broadcast %cst_3 : f32 to vector<16x1xf32>
    %11 = arith.divf %9, %10 : vector<16x1xf32>
    %cst_4 = arith.constant 9.99999996E-13 : f32
    %12 = vector.broadcast %cst_4 : f32 to vector<16x1xf32>
    %13 = arith.addf %11, %12 : vector<16x1xf32>
    %14 = math.rsqrt %13 : vector<16x1xf32>
    %15 = vector.broadcast %14 : vector<16x1xf32> to vector<16x32xf32>
    %16 = arith.mulf %6, %15 : vector<16x32xf32>
    %c0_5 = arith.constant 0 : index
    %c0_6 = arith.constant 0 : index
    %17 = vector.load %arg2[%c0_5, %c0_6] : memref<1x32xf32, #tpu.memory_space<vmem>>, vector<1x32xf32>
    %18 = vector.broadcast %17 : vector<1x32xf32> to vector<16x32xf32>
    %19 = arith.mulf %16, %18 : vector<16x32xf32>
    %c0_7 = arith.constant 0 : index
    %c0_8 = arith.constant 0 : index
    %20 = vector.load %arg3[%c0_7, %c0_8] : memref<1x32xf32, #tpu.memory_space<vmem>>, vector<1x32xf32>
    %21 = vector.broadcast %20 : vector<1x32xf32> to vector<16x32xf32>
    %22 = arith.addf %19, %21 : vector<16x32xf32>
    %c0_9 = arith.constant 0 : index
    %c0_10 = arith.constant 0 : index
    %23 = vector.load %arg4[%c0_9, %c0_10] : memref<16x32xf32, #tpu.memory_space<vmem>>, vector<16x32xf32>
    tpu.vector_store %arg4[%c0_9, %c0_10], %22 {strides = array<i32>} : memref<16x32xf32, #tpu.memory_space<vmem>>, vector<16x32xf32>,
    return
  }
  func.func @transform_0(%arg0: i32) -> (i32, i32) {
    %c0_i32 = arith.constant 0 : i32
    %c0_i32_0 = arith.constant 0 : i32
    return %arg0, %c0_i32 : i32, i32
  }
  func.func @transform_1(%arg0: i32) -> (i32, i32) {
    %c0_i32 = arith.constant 0 : i32
    %c0_i32_0 = arith.constant 0 : i32
    %c0_i32_1 = arith.constant 0 : i32
    return %c0_i32, %c0_i32_0 : i32, i32
  }
  func.func @transform_2(%arg0: i32) -> (i32, i32) {
    %c0_i32 = arith.constant 0 : i32
    %c0_i32_0 = arith.constant 0 : i32
    %c0_i32_1 = arith.constant 0 : i32
    return %c0_i32, %c0_i32_0 : i32, i32
  }
  func.func @transform_3(%arg0: i32) -> (i32, i32) {
    %c0_i32 = arith.constant 0 : i32
    %c0_i32_0 = arith.constant 0 : i32
    return %arg0, %c0_i32 : i32, i32
  }
}

module attributes {stable_mosaic.version = 11 : i64} {
  func.func @_linear_kernel(%arg0: i32, %arg1: i32, %arg2: i32, %arg3: memref<16x32xbf16, #tpu.memory_space<vmem>>, %arg4: memref<32x96xbf16, #tpu.memory_space<vmem>>, %arg5: memref<1x96xf32, #tpu.memory_space<vmem>>, %arg6: memref<16x96xf32, #tpu.memory_space<vmem>>, %arg7: memref<16x96xf32, #tpu.memory_space<vmem>>) attributes {dimension_semantics = [#tpu.dimension_semantics<parallel>, #tpu.dimension_semantics<parallel>, #tpu.dimension_semantics<arbitrary>], iteration_bounds = array<i64: 1, 1, 1>, scalar_prefetch = 0 : i64, scratch_operands = 1 : i64, tpu.core_type = #tpu.core_type<tc>, window_params = [{transform_indices = @transform_0, window_bounds = array<i64: 16, 32>}, {transform_indices = @transform_1, window_bounds = array<i64: 32, 96>}, {transform_indices = @transform_2, window_bounds = array<i64: 1, 96>}, {transform_indices = @transform_3, window_bounds = array<i64: 16, 96>}]} {
    %c0_i32 = arith.constant 0 : i32
    %0 = arith.cmpi eq, %arg2, %c0_i32 : i32
    %1 = arith.extui %0 : i1 to i32
    %c0_i32_0 = arith.constant 0 : i32
    %2 = arith.cmpi ne, %1, %c0_i32_0 : i32
    scf.if %2 {
      %cst_10 = arith.constant 0.000000e+00 : f32
      %12 = vector.broadcast %cst_10 : f32 to vector<16x96xf32>
      %c0_11 = arith.constant 0 : index
      %c0_12 = arith.constant 0 : index
      %13 = vector.load %arg7[%c0_11, %c0_12] : memref<16x96xf32, #tpu.memory_space<vmem>>, vector<16x96xf32>
      tpu.vector_store %arg7[%c0_11, %c0_12], %12 {strides = array<i32>} : memref<16x96xf32, #tpu.memory_space<vmem>>, vector<16x96xf32>,
    } else {
    }
    %c0 = arith.constant 0 : index
    %c0_1 = arith.constant 0 : index
    %3 = vector.load %arg7[%c0, %c0_1] : memref<16x96xf32, #tpu.memory_space<vmem>>, vector<16x96xf32>
    %c0_2 = arith.constant 0 : index
    %c0_3 = arith.constant 0 : index
    %4 = vector.load %arg3[%c0_2, %c0_3] : memref<16x32xbf16, #tpu.memory_space<vmem>>, vector<16x32xbf16>
    %c0_4 = arith.constant 0 : index
    %c0_5 = arith.constant 0 : index
    %5 = vector.load %arg4[%c0_4, %c0_5] : memref<32x96xbf16, #tpu.memory_space<vmem>>, vector<32x96xbf16>
    %cst = arith.constant dense<0.000000e+00> : vector<16x96xf32>
    %6 = tpu.matmul %4, %5, %cst {dimension_numbers = #tpu.dot_dimension_numbers<[1], [0], [0], [1], [0, 0, 1, 1], [], []>} : vector<16x32xbf16>, vector<32x96xbf16>, vector<16x96xf32> -> vector<16x96xf32>
    %7 = arith.addf %3, %6 : vector<16x96xf32>
    %c0_6 = arith.constant 0 : index
    %c0_7 = arith.constant 0 : index
    %8 = vector.load %arg7[%c0_6, %c0_7] : memref<16x96xf32, #tpu.memory_space<vmem>>, vector<16x96xf32>
    tpu.vector_store %arg7[%c0_6, %c0_7], %7 {strides = array<i32>} : memref<16x96xf32, #tpu.memory_space<vmem>>, vector<16x96xf32>,
    %c0_i32_8 = arith.constant 0 : i32
    %9 = arith.cmpi eq, %arg2, %c0_i32_8 : i32
    %10 = arith.extui %9 : i1 to i32
    %c0_i32_9 = arith.constant 0 : i32
    %11 = arith.cmpi ne, %10, %c0_i32_9 : i32
    scf.if %11 {
      %c0_10 = arith.constant 0 : index
      %c0_11 = arith.constant 0 : index
      %12 = vector.load %arg7[%c0_10, %c0_11] : memref<16x96xf32, #tpu.memory_space<vmem>>, vector<16x96xf32>
      %c0_12 = arith.constant 0 : index
      %c0_13 = arith.constant 0 : index
      %13 = vector.load %arg5[%c0_12, %c0_13] : memref<1x96xf32, #tpu.memory_space<vmem>>, vector<1x96xf32>
      %14 = vector.broadcast %13 : vector<1x96xf32> to vector<16x96xf32>
      %15 = arith.addf %12, %14 : vector<16x96xf32>
      %c0_14 = arith.constant 0 : index
      %c0_15 = arith.constant 0 : index
      %16 = vector.load %arg6[%c0_14, %c0_15] : memref<16x96xf32, #tpu.memory_space<vmem>>, vector<16x96xf32>
      tpu.vector_store %arg6[%c0_14, %c0_15], %15 {strides = array<i32>} : memref<16x96xf32, #tpu.memory_space<vmem>>, vector<16x96xf32>,
    } else {
    }
    return
  }
  func.func @transform_0(%arg0: i32, %arg1: i32, %arg2: i32) -> (i32, i32) {
    %c0_i32 = arith.constant 0 : i32
    return %arg0, %arg2 : i32, i32
  }
  func.func @transform_1(%arg0: i32, %arg1: i32, %arg2: i32) -> (i32, i32) {
    %c0_i32 = arith.constant 0 : i32
    return %arg2, %arg1 : i32, i32
  }
  func.func @transform_2(%arg0: i32, %arg1: i32, %arg2: i32) -> (i32, i32) {
    %c0_i32 = arith.constant 0 : i32
    %c0_i32_0 = arith.constant 0 : i32
    return %c0_i32, %arg1 : i32, i32
  }
  func.func @transform_3(%arg0: i32, %arg1: i32, %arg2: i32) -> (i32, i32) {
    %c0_i32 = arith.constant 0 : i32
    return %arg0, %arg1 : i32, i32
  }
}

module attributes {stable_mosaic.version = 11 : i64} {
  func.func @_attn_kernel(%arg0: i32, %arg1: memref<1x8x96xbf16, #tpu.memory_space<vmem>>, %arg2: memref<1x1x8xf32, #tpu.memory_space<vmem>>, %arg3: memref<1x8x32xf32, #tpu.memory_space<vmem>>) attributes {dimension_semantics = [#tpu.dimension_semantics<parallel>], iteration_bounds = array<i64: 2>, scalar_prefetch = 0 : i64, scratch_operands = 0 : i64, tpu.core_type = #tpu.core_type<tc>, window_params = [{transform_indices = @transform_0, window_bounds = array<i64: 1, 8, 96>}, {transform_indices = @transform_1, window_bounds = array<i64: 1, 1, 8>}, {transform_indices = @transform_2, window_bounds = array<i64: 1, 8, 32>}]} {
    %c0 = arith.constant 0 : index
    %c0_0 = arith.constant 0 : index
    %c0_1 = arith.constant 0 : index
    %0 = vector.load %arg1[%c0, %c0_0, %c0_1] : memref<1x8x96xbf16, #tpu.memory_space<vmem>>, vector<1x8x96xbf16>
    %1 = vector.shape_cast %0 : vector<1x8x96xbf16> to vector<8x96xbf16>
    %c0_2 = arith.constant 0 : index
    %c0_3 = arith.constant 0 : index
    %c0_4 = arith.constant 0 : index
    %2 = vector.load %arg2[%c0_2, %c0_3, %c0_4] : memref<1x1x8xf32, #tpu.memory_space<vmem>>, vector<1x1x8xf32>
    %3 = vector.shape_cast %2 : vector<1x1x8xf32> to vector<1x8xf32>
    %4 = vector.extract_strided_slice %1 {offsets = [0, 0], sizes = [8, 16], strides = [1, 1]} : vector<8x96xbf16> to vector<8x16xbf16>
    %cst = arith.constant 2.500000e-01 : bf16
    %5 = vector.broadcast %cst : bf16 to vector<8x16xbf16>
    %6 = arith.mulf %4, %5 : vector<8x16xbf16>
    %7 = vector.extract_strided_slice %1 {offsets = [0, 32], sizes = [8, 16], strides = [1, 1]} : vector<8x96xbf16> to vector<8x16xbf16>
    %8 = vector.extract_strided_slice %1 {offsets = [0, 64], sizes = [8, 16], strides = [1, 1]} : vector<8x96xbf16> to vector<8x16xbf16>
    %cst_5 = arith.constant dense<0.000000e+00> : vector<8x8xf32>
    %9 = tpu.matmul %6, %7, %cst_5 {dimension_numbers = #tpu.dot_dimension_numbers<[1], [1], [0], [0], [0, 0, 1, 0], [], []>} : vector<8x16xbf16>, vector<8x16xbf16>, vector<8x8xf32> -> vector<8x8xf32>
    %10 = vector.broadcast %3 : vector<1x8xf32> to vector<8x8xf32>
    %11 = arith.addf %9, %10 : vector<8x8xf32>
    %cst_6 = arith.constant dense<0xFF800000> : vector<8xf32>
    %12 = vector.multi_reduction <maximumf>, %11, %cst_6 [1] : vector<8x8xf32> to vector<8xf32>
    %13 = vector.shape_cast %12 : vector<8xf32> to vector<8x1xf32>
    %14 = vector.broadcast %13 : vector<8x1xf32> to vector<8x8xf32>
    %15 = arith.subf %11, %14 : vector<8x8xf32>
    %16 = math.exp %15 : vector<8x8xf32>
    %cst_7 = arith.constant dense<0.000000e+00> : vector<8xf32>
    %17 = vector.multi_reduction <add>, %16, %cst_7 [1] : vector<8x8xf32> to vector<8xf32>
    %18 = vector.shape_cast %17 : vector<8xf32> to vector<8x1xf32>
    %19 = tpu.reciprocal %18 {approx = true} : vector<8x1xf32> -> vector<8x1xf32>
    %20 = arith.truncf %16 : vector<8x8xf32> to vector<8x8xbf16>
    %cst_8 = arith.constant dense<0.000000e+00> : vector<8x16xf32>
    %21 = tpu.matmul %20, %8, %cst_8 {dimension_numbers = #tpu.dot_dimension_numbers<[1], [0], [0], [1], [0, 0, 1, 1], [], []>} : vector<8x8xbf16>, vector<8x16xbf16>, vector<8x16xf32> -> vector<8x16xf32>
    %22 = vector.broadcast %19 : vector<8x1xf32> to vector<8x16xf32>
    %23 = arith.mulf %21, %22 : vector<8x16xf32>
    %24 = vector.extract_strided_slice %1 {offsets = [0, 16], sizes = [8, 16], strides = [1, 1]} : vector<8x96xbf16> to vector<8x16xbf16>
    %cst_9 = arith.constant 2.500000e-01 : bf16
    %25 = vector.broadcast %cst_9 : bf16 to vector<8x16xbf16>
    %26 = arith.mulf %24, %25 : vector<8x16xbf16>
    %27 = vector.extract_strided_slice %1 {offsets = [0, 48], sizes = [8, 16], strides = [1, 1]} : vector<8x96xbf16> to vector<8x16xbf16>
    %28 = vector.extract_strided_slice %1 {offsets = [0, 80], sizes = [8, 16], strides = [1, 1]} : vector<8x96xbf16> to vector<8x16xbf16>
    %cst_10 = arith.constant dense<0.000000e+00> : vector<8x8xf32>
    %29 = tpu.matmul %26, %27, %cst_10 {dimension_numbers = #tpu.dot_dimension_numbers<[1], [1], [0], [0], [0, 0, 1, 0], [], []>} : vector<8x16xbf16>, vector<8x16xbf16>, vector<8x8xf32> -> vector<8x8xf32>
    %30 = vector.broadcast %3 : vector<1x8xf32> to vector<8x8xf32>
    %31 = arith.addf %29, %30 : vector<8x8xf32>
    %cst_11 = arith.constant dense<0xFF800000> : vector<8xf32>
    %32 = vector.multi_reduction <maximumf>, %31, %cst_11 [1] : vector<8x8xf32> to vector<8xf32>
    %33 = vector.shape_cast %32 : vector<8xf32> to vector<8x1xf32>
    %34 = vector.broadcast %33 : vector<8x1xf32> to vector<8x8xf32>
    %35 = arith.subf %31, %34 : vector<8x8xf32>
    %36 = math.exp %35 : vector<8x8xf32>
    %cst_12 = arith.constant dense<0.000000e+00> : vector<8xf32>
    %37 = vector.multi_reduction <add>, %36, %cst_12 [1] : vector<8x8xf32> to vector<8xf32>
    %38 = vector.shape_cast %37 : vector<8xf32> to vector<8x1xf32>
    %39 = tpu.reciprocal %38 {approx = true} : vector<8x1xf32> -> vector<8x1xf32>
    %40 = arith.truncf %36 : vector<8x8xf32> to vector<8x8xbf16>
    %cst_13 = arith.constant dense<0.000000e+00> : vector<8x16xf32>
    %41 = tpu.matmul %40, %28, %cst_13 {dimension_numbers = #tpu.dot_dimension_numbers<[1], [0], [0], [1], [0, 0, 1, 1], [], []>} : vector<8x8xbf16>, vector<8x16xbf16>, vector<8x16xf32> -> vector<8x16xf32>
    %42 = vector.broadcast %39 : vector<8x1xf32> to vector<8x16xf32>
    %43 = arith.mulf %41, %42 : vector<8x16xf32>
    %44 = tpu.concatenate %23, %43 in 1 : vector<8x16xf32>, vector<8x16xf32> -> vector<8x32xf32>
    %c0_14 = arith.constant 0 : index
    %c0_15 = arith.constant 0 : index
    %c0_16 = arith.constant 0 : index
    %45 = vector.load %arg3[%c0_14, %c0_15, %c0_16] : memref<1x8x32xf32, #tpu.memory_space<vmem>>, vector<1x8x32xf32>
    %46 = vector.shape_cast %45 : vector<1x8x32xf32> to vector<8x32xf32>
    %47 = vector.shape_cast %44 : vector<8x32xf32> to vector<1x8x32xf32>
    tpu.vector_store %arg3[%c0_14, %c0_15, %c0_16], %47 {strides = array<i32>} : memref<1x8x32xf32, #tpu.memory_space<vmem>>, vector<1x8x32xf32>,
    return
  }
  func.func @transform_0(%arg0: i32) -> (i32, i32, i32) {
    %c0_i32 = arith.constant 0 : i32
    %c0_i32_0 = arith.constant 0 : i32
    %c0_i32_1 = arith.constant 0 : i32
    return %arg0, %c0_i32, %c0_i32_0 : i32, i32, i32
  }
  func.func @transform_1(%arg0: i32) -> (i32, i32, i32) {
    %c0_i32 = arith.constant 0 : i32
    %c0_i32_0 = arith.constant 0 : i32
    %c0_i32_1 = arith.constant 0 : i32
    return %arg0, %c0_i32, %c0_i32_0 : i32, i32, i32
  }
  func.func @transform_2(%arg0: i32) -> (i32, i32, i32) {
    %c0_i32 = arith.constant 0 : i32
    %c0_i32_0 = arith.constant 0 : i32
    %c0_i32_1 = arith.constant 0 : i32
    return %arg0, %c0_i32, %c0_i32_0 : i32, i32, i32
  }
}

module attributes {stable_mosaic.version = 11 : i64} {
  func.func @_linear_ln_kernel(%arg0: i32, %arg1: i32, %arg2: i32, %arg3: memref<16x32xbf16, #tpu.memory_space<vmem>>, %arg4: memref<32x32xbf16, #tpu.memory_space<vmem>>, %arg5: memref<1x32xf32, #tpu.memory_space<vmem>>, %arg6: memref<16x32xf32, #tpu.memory_space<vmem>>, %arg7: memref<1x32xf32, #tpu.memory_space<vmem>>, %arg8: memref<1x32xf32, #tpu.memory_space<vmem>>, %arg9: memref<16x32xf32, #tpu.memory_space<vmem>>, %arg10: memref<16x32xf32, #tpu.memory_space<vmem>>) attributes {dimension_semantics = [#tpu.dimension_semantics<parallel>, #tpu.dimension_semantics<parallel>, #tpu.dimension_semantics<arbitrary>], iteration_bounds = array<i64: 1, 1, 1>, scalar_prefetch = 0 : i64, scratch_operands = 1 : i64, tpu.core_type = #tpu.core_type<tc>, window_params = [{transform_indices = @transform_0, window_bounds = array<i64: 16, 32>}, {transform_indices = @transform_1, window_bounds = array<i64: 32, 32>}, {pipeline_mode = #tpu.pipeline_mode<synchronous>, transform_indices = @transform_2, window_bounds = array<i64: 1, 32>}, {transform_indices = @transform_3, window_bounds = array<i64: 16, 32>}, {pipeline_mode = #tpu.pipeline_mode<synchronous>, transform_indices = @transform_4, window_bounds = array<i64: 1, 32>}, {pipeline_mode = #tpu.pipeline_mode<synchronous>, transform_indices = @transform_5, window_bounds = array<i64: 1, 32>}, {transform_indices = @transform_6, window_bounds = array<i64: 16, 32>}]} {
    %c0_i32 = arith.constant 0 : i32
    %0 = arith.cmpi eq, %arg2, %c0_i32 : i32
    %1 = arith.extui %0 : i1 to i32
    %c0_i32_0 = arith.constant 0 : i32
    %2 = arith.cmpi ne, %1, %c0_i32_0 : i32
    scf.if %2 {
      %cst_10 = arith.constant 0.000000e+00 : f32
      %12 = vector.broadcast %cst_10 : f32 to vector<16x32xf32>
      %c0_11 = arith.constant 0 : index
      %c0_12 = arith.constant 0 : index
      %13 = vector.load %arg10[%c0_11, %c0_12] : memref<16x32xf32, #tpu.memory_space<vmem>>, vector<16x32xf32>
      tpu.vector_store %arg10[%c0_11, %c0_12], %12 {strides = array<i32>} : memref<16x32xf32, #tpu.memory_space<vmem>>, vector<16x32xf32>,
    } else {
    }
    %c0 = arith.constant 0 : index
    %c0_1 = arith.constant 0 : index
    %3 = vector.load %arg10[%c0, %c0_1] : memref<16x32xf32, #tpu.memory_space<vmem>>, vector<16x32xf32>
    %c0_2 = arith.constant 0 : index
    %c0_3 = arith.constant 0 : index
    %4 = vector.load %arg3[%c0_2, %c0_3] : memref<16x32xbf16, #tpu.memory_space<vmem>>, vector<16x32xbf16>
    %c0_4 = arith.constant 0 : index
    %c0_5 = arith.constant 0 : index
    %5 = vector.load %arg4[%c0_4, %c0_5] : memref<32x32xbf16, #tpu.memory_space<vmem>>, vector<32x32xbf16>
    %cst = arith.constant dense<0.000000e+00> : vector<16x32xf32>
    %6 = tpu.matmul %4, %5, %cst {dimension_numbers = #tpu.dot_dimension_numbers<[1], [0], [0], [1], [0, 0, 1, 1], [], []>} : vector<16x32xbf16>, vector<32x32xbf16>, vector<16x32xf32> -> vector<16x32xf32>
    %7 = arith.addf %3, %6 : vector<16x32xf32>
    %c0_6 = arith.constant 0 : index
    %c0_7 = arith.constant 0 : index
    %8 = vector.load %arg10[%c0_6, %c0_7] : memref<16x32xf32, #tpu.memory_space<vmem>>, vector<16x32xf32>
    tpu.vector_store %arg10[%c0_6, %c0_7], %7 {strides = array<i32>} : memref<16x32xf32, #tpu.memory_space<vmem>>, vector<16x32xf32>,
    %c0_i32_8 = arith.constant 0 : i32
    %9 = arith.cmpi eq, %arg2, %c0_i32_8 : i32
    %10 = arith.extui %9 : i1 to i32
    %c0_i32_9 = arith.constant 0 : i32
    %11 = arith.cmpi ne, %10, %c0_i32_9 : i32
    scf.if %11 {
      %c0_10 = arith.constant 0 : index
      %c0_11 = arith.constant 0 : index
      %12 = vector.load %arg10[%c0_10, %c0_11] : memref<16x32xf32, #tpu.memory_space<vmem>>, vector<16x32xf32>
      %c0_12 = arith.constant 0 : index
      %c0_13 = arith.constant 0 : index
      %13 = vector.load %arg5[%c0_12, %c0_13] : memref<1x32xf32, #tpu.memory_space<vmem>>, vector<1x32xf32>
      %14 = vector.broadcast %13 : vector<1x32xf32> to vector<16x32xf32>
      %15 = arith.addf %12, %14 : vector<16x32xf32>
      %c0_14 = arith.constant 0 : index
      %c0_15 = arith.constant 0 : index
      %16 = vector.load %arg6[%c0_14, %c0_15] : memref<16x32xf32, #tpu.memory_space<vmem>>, vector<16x32xf32>
      %17 = arith.addf %15, %16 : vector<16x32xf32>
      %cst_16 = arith.constant dense<0.000000e+00> : vector<16xf32>
      %18 = vector.multi_reduction <add>, %17, %cst_16 [1] : vector<16x32xf32> to vector<16xf32>
      %19 = vector.shape_cast %18 : vector<16xf32> to vector<16x1xf32>
      %cst_17 = arith.constant 3.200000e+01 : f32
      %20 = vector.broadcast %cst_17 : f32 to vector<16x1xf32>
      %21 = arith.divf %19, %20 : vector<16x1xf32>
      %22 = vector.broadcast %21 : vector<16x1xf32> to vector<16x32xf32>
      %23 = arith.subf %17, %22 : vector<16x32xf32>
      %24 = arith.mulf %23, %23 : vector<16x32xf32>
      %cst_18 = arith.constant dense<0.000000e+00> : vector<16xf32>
      %25 = vector.multi_reduction <add>, %24, %cst_18 [1] : vector<16x32xf32> to vector<16xf32>
      %26 = vector.shape_cast %25 : vector<16xf32> to vector<16x1xf32>
      %cst_19 = arith.constant 3.200000e+01 : f32
      %27 = vector.broadcast %cst_19 : f32 to vector<16x1xf32>
      %28 = arith.divf %26, %27 : vector<16x1xf32>
      %cst_20 = arith.constant 9.99999996E-13 : f32
      %29 = vector.broadcast %cst_20 : f32 to vector<16x1xf32>
      %30 = arith.addf %28, %29 : vector<16x1xf32>
      %31 = math.rsqrt %30 : vector<16x1xf32>
      %32 = vector.broadcast %31 : vector<16x1xf32> to vector<16x32xf32>
      %33 = arith.mulf %23, %32 : vector<16x32xf32>
      %c0_21 = arith.constant 0 : index
      %c0_22 = arith.constant 0 : index
      %34 = vector.load %arg7[%c0_21, %c0_22] : memref<1x32xf32, #tpu.memory_space<vmem>>, vector<1x32xf32>
      %35 = vector.broadcast %34 : vector<1x32xf32> to vector<16x32xf32>
      %36 = arith.mulf %33, %35 : vector<16x32xf32>
      %c0_23 = arith.constant 0 : index
      %c0_24 = arith.constant 0 : index
      %37 = vector.load %arg8[%c0_23, %c0_24] : memref<1x32xf32, #tpu.memory_space<vmem>>, vector<1x32xf32>
      %38 = vector.broadcast %37 : vector<1x32xf32> to vector<16x32xf32>
      %39 = arith.addf %36, %38 : vector<16x32xf32>
      %c0_25 = arith.constant 0 : index
      %c0_26 = arith.constant 0 : index
      %40 = vector.load %arg9[%c0_25, %c0_26] : memref<16x32xf32, #tpu.memory_space<vmem>>, vector<16x32xf32>
      tpu.vector_store %arg9[%c0_25, %c0_26], %39 {strides = array<i32>} : memref<16x32xf32, #tpu.memory_space<vmem>>, vector<16x32xf32>,
    } else {
    }
    return
  }
  func.func @transform_0(%arg0: i32, %arg1: i32, %arg2: i32) -> (i32, i32) {
    %c0_i32 = arith.constant 0 : i32
    return %arg0, %arg2 : i32, i32
  }
  func.func @transform_1(%arg0: i32, %arg1: i32, %arg2: i32) -> (i32, i32) {
    %c0_i32 = arith.constant 0 : i32
    %c0_i32_0 = arith.constant 0 : i32
    return %arg2, %c0_i32 : i32, i32
  }
  func.func @transform_2(%arg0: i32, %arg1: i32, %arg2: i32) -> (i32, i32) {
    %c0_i32 = arith.constant 0 : i32
    %c0_i32_0 = arith.constant 0 : i32
    %c0_i32_1 = arith.constant 0 : i32
    return %c0_i32, %c0_i32_0 : i32, i32
  }
  func.func @transform_3(%arg0: i32, %arg1: i32, %arg2: i32) -> (i32, i32) {
    %c0_i32 = arith.constant 0 : i32
    %c0_i32_0 = arith.constant 0 : i32
    return %arg0, %c0_i32 : i32, i32
  }
  func.func @transform_4(%arg0: i32, %arg1: i32, %arg2: i32) -> (i32, i32) {
    %c0_i32 = arith.constant 0 : i32
    %c0_i32_0 = arith.constant 0 : i32
    %c0_i32_1 = arith.constant 0 : i32
    return %c0_i32, %c0_i32_0 : i32, i32
  }
  func.func @transform_5(%arg0: i32, %arg1: i32, %arg2: i32) -> (i32, i32) {
    %c0_i32 = arith.constant 0 : i32
    %c0_i32_0 = arith.constant 0 : i32
    %c0_i32_1 = arith.constant 0 : i32
    return %c0_i32, %c0_i32_0 : i32, i32
  }
  func.func @transform_6(%arg0: i32, %arg1: i32, %arg2: i32) -> (i32, i32) {
    %c0_i32 = arith.constant 0 : i32
    %c0_i32_0 = arith.constant 0 : i32
    return %arg0, %c0_i32 : i32, i32
  }
}

module attributes {stable_mosaic.version = 11 : i64} {
  func.func @_linear_kernel(%arg0: i32, %arg1: i32, %arg2: i32, %arg3: memref<16x32xbf16, #tpu.memory_space<vmem>>, %arg4: memref<32x64xbf16, #tpu.memory_space<vmem>>, %arg5: memref<1x64xf32, #tpu.memory_space<vmem>>, %arg6: memref<16x64xf32, #tpu.memory_space<vmem>>, %arg7: memref<16x64xf32, #tpu.memory_space<vmem>>) attributes {dimension_semantics = [#tpu.dimension_semantics<parallel>, #tpu.dimension_semantics<parallel>, #tpu.dimension_semantics<arbitrary>], iteration_bounds = array<i64: 1, 1, 1>, scalar_prefetch = 0 : i64, scratch_operands = 1 : i64, tpu.core_type = #tpu.core_type<tc>, window_params = [{transform_indices = @transform_0, window_bounds = array<i64: 16, 32>}, {transform_indices = @transform_1, window_bounds = array<i64: 32, 64>}, {transform_indices = @transform_2, window_bounds = array<i64: 1, 64>}, {transform_indices = @transform_3, window_bounds = array<i64: 16, 64>}]} {
    %c0_i32 = arith.constant 0 : i32
    %0 = arith.cmpi eq, %arg2, %c0_i32 : i32
    %1 = arith.extui %0 : i1 to i32
    %c0_i32_0 = arith.constant 0 : i32
    %2 = arith.cmpi ne, %1, %c0_i32_0 : i32
    scf.if %2 {
      %cst_10 = arith.constant 0.000000e+00 : f32
      %12 = vector.broadcast %cst_10 : f32 to vector<16x64xf32>
      %c0_11 = arith.constant 0 : index
      %c0_12 = arith.constant 0 : index
      %13 = vector.load %arg7[%c0_11, %c0_12] : memref<16x64xf32, #tpu.memory_space<vmem>>, vector<16x64xf32>
      tpu.vector_store %arg7[%c0_11, %c0_12], %12 {strides = array<i32>} : memref<16x64xf32, #tpu.memory_space<vmem>>, vector<16x64xf32>,
    } else {
    }
    %c0 = arith.constant 0 : index
    %c0_1 = arith.constant 0 : index
    %3 = vector.load %arg7[%c0, %c0_1] : memref<16x64xf32, #tpu.memory_space<vmem>>, vector<16x64xf32>
    %c0_2 = arith.constant 0 : index
    %c0_3 = arith.constant 0 : index
    %4 = vector.load %arg3[%c0_2, %c0_3] : memref<16x32xbf16, #tpu.memory_space<vmem>>, vector<16x32xbf16>
    %c0_4 = arith.constant 0 : index
    %c0_5 = arith.constant 0 : index
    %5 = vector.load %arg4[%c0_4, %c0_5] : memref<32x64xbf16, #tpu.memory_space<vmem>>, vector<32x64xbf16>
    %cst = arith.constant dense<0.000000e+00> : vector<16x64xf32>
    %6 = tpu.matmul %4, %5, %cst {dimension_numbers = #tpu.dot_dimension_numbers<[1], [0], [0], [1], [0, 0, 1, 1], [], []>} : vector<16x32xbf16>, vector<32x64xbf16>, vector<16x64xf32> -> vector<16x64xf32>
    %7 = arith.addf %3, %6 : vector<16x64xf32>
    %c0_6 = arith.constant 0 : index
    %c0_7 = arith.constant 0 : index
    %8 = vector.load %arg7[%c0_6, %c0_7] : memref<16x64xf32, #tpu.memory_space<vmem>>, vector<16x64xf32>
    tpu.vector_store %arg7[%c0_6, %c0_7], %7 {strides = array<i32>} : memref<16x64xf32, #tpu.memory_space<vmem>>, vector<16x64xf32>,
    %c0_i32_8 = arith.constant 0 : i32
    %9 = arith.cmpi eq, %arg2, %c0_i32_8 : i32
    %10 = arith.extui %9 : i1 to i32
    %c0_i32_9 = arith.constant 0 : i32
    %11 = arith.cmpi ne, %10, %c0_i32_9 : i32
    scf.if %11 {
      %c0_10 = arith.constant 0 : index
      %c0_11 = arith.constant 0 : index
      %12 = vector.load %arg7[%c0_10, %c0_11] : memref<16x64xf32, #tpu.memory_space<vmem>>, vector<16x64xf32>
      %c0_12 = arith.constant 0 : index
      %c0_13 = arith.constant 0 : index
      %13 = vector.load %arg5[%c0_12, %c0_13] : memref<1x64xf32, #tpu.memory_space<vmem>>, vector<1x64xf32>
      %14 = vector.broadcast %13 : vector<1x64xf32> to vector<16x64xf32>
      %15 = arith.addf %12, %14 : vector<16x64xf32>
      %cst_14 = arith.constant 5.000000e-01 : f32
      %16 = vector.broadcast %cst_14 : f32 to vector<16x64xf32>
      %17 = arith.mulf %16, %15 : vector<16x64xf32>
      %cst_15 = arith.constant 4.471500e-02 : f32
      %18 = vector.broadcast %cst_15 : f32 to vector<16x64xf32>
      %19 = arith.mulf %18, %15 : vector<16x64xf32>
      %20 = arith.mulf %19, %15 : vector<16x64xf32>
      %21 = arith.mulf %20, %15 : vector<16x64xf32>
      %22 = arith.addf %15, %21 : vector<16x64xf32>
      %cst_16 = arith.constant 0.797884583 : f32
      %23 = vector.broadcast %cst_16 : f32 to vector<16x64xf32>
      %24 = arith.mulf %23, %22 : vector<16x64xf32>
      %25 = math.tanh %24 : vector<16x64xf32>
      %cst_17 = arith.constant 1.000000e+00 : f32
      %26 = vector.broadcast %cst_17 : f32 to vector<16x64xf32>
      %27 = arith.addf %26, %25 : vector<16x64xf32>
      %28 = arith.mulf %17, %27 : vector<16x64xf32>
      %c0_18 = arith.constant 0 : index
      %c0_19 = arith.constant 0 : index
      %29 = vector.load %arg6[%c0_18, %c0_19] : memref<16x64xf32, #tpu.memory_space<vmem>>, vector<16x64xf32>
      tpu.vector_store %arg6[%c0_18, %c0_19], %28 {strides = array<i32>} : memref<16x64xf32, #tpu.memory_space<vmem>>, vector<16x64xf32>,
    } else {
    }
    return
  }
  func.func @transform_0(%arg0: i32, %arg1: i32, %arg2: i32) -> (i32, i32) {
    %c0_i32 = arith.constant 0 : i32
    return %arg0, %arg2 : i32, i32
  }
  func.func @transform_1(%arg0: i32, %arg1: i32, %arg2: i32) -> (i32, i32) {
    %c0_i32 = arith.constant 0 : i32
    return %arg2, %arg1 : i32, i32
  }
  func.func @transform_2(%arg0: i32, %arg1: i32, %arg2: i32) -> (i32, i32) {
    %c0_i32 = arith.constant 0 : i32
    %c0_i32_0 = arith.constant 0 : i32
    return %c0_i32, %arg1 : i32, i32
  }
  func.func @transform_3(%arg0: i32, %arg1: i32, %arg2: i32) -> (i32, i32) {
    %c0_i32 = arith.constant 0 : i32
    return %arg0, %arg1 : i32, i32
  }
}

module attributes {stable_mosaic.version = 11 : i64} {
  func.func @_linear_kernel(%arg0: i32, %arg1: i32, %arg2: i32, %arg3: memref<2x32xbf16, #tpu.memory_space<vmem>>, %arg4: memref<32x32xbf16, #tpu.memory_space<vmem>>, %arg5: memref<1x32xf32, #tpu.memory_space<vmem>>, %arg6: memref<2x32xf32, #tpu.memory_space<vmem>>, %arg7: memref<2x32xf32, #tpu.memory_space<vmem>>) attributes {dimension_semantics = [#tpu.dimension_semantics<parallel>, #tpu.dimension_semantics<parallel>, #tpu.dimension_semantics<arbitrary>], iteration_bounds = array<i64: 1, 1, 1>, scalar_prefetch = 0 : i64, scratch_operands = 1 : i64, tpu.core_type = #tpu.core_type<tc>, window_params = [{transform_indices = @transform_0, window_bounds = array<i64: 2, 32>}, {transform_indices = @transform_1, window_bounds = array<i64: 32, 32>}, {transform_indices = @transform_2, window_bounds = array<i64: 1, 32>}, {transform_indices = @transform_3, window_bounds = array<i64: 2, 32>}]} {
    %c0_i32 = arith.constant 0 : i32
    %0 = arith.cmpi eq, %arg2, %c0_i32 : i32
    %1 = arith.extui %0 : i1 to i32
    %c0_i32_0 = arith.constant 0 : i32
    %2 = arith.cmpi ne, %1, %c0_i32_0 : i32
    scf.if %2 {
      %cst_10 = arith.constant 0.000000e+00 : f32
      %12 = vector.broadcast %cst_10 : f32 to vector<2x32xf32>
      %c0_11 = arith.constant 0 : index
      %c0_12 = arith.constant 0 : index
      %13 = vector.load %arg7[%c0_11, %c0_12] : memref<2x32xf32, #tpu.memory_space<vmem>>, vector<2x32xf32>
      tpu.vector_store %arg7[%c0_11, %c0_12], %12 {strides = array<i32>} : memref<2x32xf32, #tpu.memory_space<vmem>>, vector<2x32xf32>,
    } else {
    }
    %c0 = arith.constant 0 : index
    %c0_1 = arith.constant 0 : index
    %3 = vector.load %arg7[%c0, %c0_1] : memref<2x32xf32, #tpu.memory_space<vmem>>, vector<2x32xf32>
    %c0_2 = arith.constant 0 : index
    %c0_3 = arith.constant 0 : index
    %4 = vector.load %arg3[%c0_2, %c0_3] : memref<2x32xbf16, #tpu.memory_space<vmem>>, vector<2x32xbf16>
    %c0_4 = arith.constant 0 : index
    %c0_5 = arith.constant 0 : index
    %5 = vector.load %arg4[%c0_4, %c0_5] : memref<32x32xbf16, #tpu.memory_space<vmem>>, vector<32x32xbf16>
    %cst = arith.constant dense<0.000000e+00> : vector<2x32xf32>
    %6 = tpu.matmul %4, %5, %cst {dimension_numbers = #tpu.dot_dimension_numbers<[1], [0], [0], [1], [0, 0, 1, 1], [], []>} : vector<2x32xbf16>, vector<32x32xbf16>, vector<2x32xf32> -> vector<2x32xf32>
    %7 = arith.addf %3, %6 : vector<2x32xf32>
    %c0_6 = arith.constant 0 : index
    %c0_7 = arith.constant 0 : index
    %8 = vector.load %arg7[%c0_6, %c0_7] : memref<2x32xf32, #tpu.memory_space<vmem>>, vector<2x32xf32>
    tpu.vector_store %arg7[%c0_6, %c0_7], %7 {strides = array<i32>} : memref<2x32xf32, #tpu.memory_space<vmem>>, vector<2x32xf32>,
    %c0_i32_8 = arith.constant 0 : i32
    %9 = arith.cmpi eq, %arg2, %c0_i32_8 : i32
    %10 = arith.extui %9 : i1 to i32
    %c0_i32_9 = arith.constant 0 : i32
    %11 = arith.cmpi ne, %10, %c0_i32_9 : i32
    scf.if %11 {
      %c0_10 = arith.constant 0 : index
      %c0_11 = arith.constant 0 : index
      %12 = vector.load %arg7[%c0_10, %c0_11] : memref<2x32xf32, #tpu.memory_space<vmem>>, vector<2x32xf32>
      %c0_12 = arith.constant 0 : index
      %c0_13 = arith.constant 0 : index
      %13 = vector.load %arg5[%c0_12, %c0_13] : memref<1x32xf32, #tpu.memory_space<vmem>>, vector<1x32xf32>
      %14 = vector.broadcast %13 : vector<1x32xf32> to vector<2x32xf32>
      %15 = arith.addf %12, %14 : vector<2x32xf32>
      %16 = math.tanh %15 : vector<2x32xf32>
      %c0_14 = arith.constant 0 : index
      %c0_15 = arith.constant 0 : index
      %17 = vector.load %arg6[%c0_14, %c0_15] : memref<2x32xf32, #tpu.memory_space<vmem>>, vector<2x32xf32>
      tpu.vector_store %arg6[%c0_14, %c0_15], %16 {strides = array<i32>} : memref<2x32xf32, #tpu.memory_space<vmem>>, vector<2x32xf32>,
    } else {
    }
    return
  }
  func.func @transform_0(%arg0: i32, %arg1: i32, %arg2: i32) -> (i32, i32) {
    %c0_i32 = arith.constant 0 : i32
    return %arg0, %arg2 : i32, i32
  }
  func.func @transform_1(%arg0: i32, %arg1: i32, %arg2: i32) -> (i32, i32) {
    %c0_i32 = arith.constant 0 : i32
    return %arg2, %arg1 : i32, i32
  }
  func.func @transform_2(%arg0: i32, %arg1: i32, %arg2: i32) -> (i32, i32) {
    %c0_i32 = arith.constant 0 : i32
    %c0_i32_0 = arith.constant 0 : i32
    return %c0_i32, %arg1 : i32, i32
  }
  func.func @transform_3(%arg0: i32, %arg1: i32, %arg2: i32) -> (i32, i32) {
    %c0_i32 = arith.constant 0 : i32
    return %arg0, %arg1 : i32, i32
  }
}

module attributes {stable_mosaic.version = 11 : i64} {
  func.func @_linear_ln_kernel(%arg0: i32, %arg1: i32, %arg2: i32, %arg3: memref<16x64xbf16, #tpu.memory_space<vmem>>, %arg4: memref<64x32xbf16, #tpu.memory_space<vmem>>, %arg5: memref<1x32xf32, #tpu.memory_space<vmem>>, %arg6: memref<16x32xf32, #tpu.memory_space<vmem>>, %arg7: memref<1x32xf32, #tpu.memory_space<vmem>>, %arg8: memref<1x32xf32, #tpu.memory_space<vmem>>, %arg9: memref<16x32xf32, #tpu.memory_space<vmem>>, %arg10: memref<16x32xf32, #tpu.memory_space<vmem>>) attributes {dimension_semantics = [#tpu.dimension_semantics<parallel>, #tpu.dimension_semantics<parallel>, #tpu.dimension_semantics<arbitrary>], iteration_bounds = array<i64: 1, 1, 1>, scalar_prefetch = 0 : i64, scratch_operands = 1 : i64, tpu.core_type = #tpu.core_type<tc>, window_params = [{transform_indices = @transform_0, window_bounds = array<i64: 16, 64>}, {transform_indices = @transform_1, window_bounds = array<i64: 64, 32>}, {pipeline_mode = #tpu.pipeline_mode<synchronous>, transform_indices = @transform_2, window_bounds = array<i64: 1, 32>}, {transform_indices = @transform_3, window_bounds = array<i64: 16, 32>}, {pipeline_mode = #tpu.pipeline_mode<synchronous>, transform_indices = @transform_4, window_bounds = array<i64: 1, 32>}, {pipeline_mode = #tpu.pipeline_mode<synchronous>, transform_indices = @transform_5, window_bounds = array<i64: 1, 32>}, {transform_indices = @transform_6, window_bounds = array<i64: 16, 32>}]} {
    %c0_i32 = arith.constant 0 : i32
    %0 = arith.cmpi eq, %arg2, %c0_i32 : i32
    %1 = arith.extui %0 : i1 to i32
    %c0_i32_0 = arith.constant 0 : i32
    %2 = arith.cmpi ne, %1, %c0_i32_0 : i32
    scf.if %2 {
      %cst_10 = arith.constant 0.000000e+00 : f32
      %12 = vector.broadcast %cst_10 : f32 to vector<16x32xf32>
      %c0_11 = arith.constant 0 : index
      %c0_12 = arith.constant 0 : index
      %13 = vector.load %arg10[%c0_11, %c0_12] : memref<16x32xf32, #tpu.memory_space<vmem>>, vector<16x32xf32>
      tpu.vector_store %arg10[%c0_11, %c0_12], %12 {strides = array<i32>} : memref<16x32xf32, #tpu.memory_space<vmem>>, vector<16x32xf32>,
    } else {
    }
    %c0 = arith.constant 0 : index
    %c0_1 = arith.constant 0 : index
    %3 = vector.load %arg10[%c0, %c0_1] : memref<16x32xf32, #tpu.memory_space<vmem>>, vector<16x32xf32>
    %c0_2 = arith.constant 0 : index
    %c0_3 = arith.constant 0 : index
    %4 = vector.load %arg3[%c0_2, %c0_3] : memref<16x64xbf16, #tpu.memory_space<vmem>>, vector<16x64xbf16>
    %c0_4 = arith.constant 0 : index
    %c0_5 = arith.constant 0 : index
    %5 = vector.load %arg4[%c0_4, %c0_5] : memref<64x32xbf16, #tpu.memory_space<vmem>>, vector<64x32xbf16>
    %cst = arith.constant dense<0.000000e+00> : vector<16x32xf32>
    %6 = tpu.matmul %4, %5, %cst {dimension_numbers = #tpu.dot_dimension_numbers<[1], [0], [0], [1], [0, 0, 1, 1], [], []>} : vector<16x64xbf16>, vector<64x32xbf16>, vector<16x32xf32> -> vector<16x32xf32>
    %7 = arith.addf %3, %6 : vector<16x32xf32>
    %c0_6 = arith.constant 0 : index
    %c0_7 = arith.constant 0 : index
    %8 = vector.load %arg10[%c0_6, %c0_7] : memref<16x32xf32, #tpu.memory_space<vmem>>, vector<16x32xf32>
    tpu.vector_store %arg10[%c0_6, %c0_7], %7 {strides = array<i32>} : memref<16x32xf32, #tpu.memory_space<vmem>>, vector<16x32xf32>,
    %c0_i32_8 = arith.constant 0 : i32
    %9 = arith.cmpi eq, %arg2, %c0_i32_8 : i32
    %10 = arith.extui %9 : i1 to i32
    %c0_i32_9 = arith.constant 0 : i32
    %11 = arith.cmpi ne, %10, %c0_i32_9 : i32
    scf.if %11 {
      %c0_10 = arith.constant 0 : index
      %c0_11 = arith.constant 0 : index
      %12 = vector.load %arg10[%c0_10, %c0_11] : memref<16x32xf32, #tpu.memory_space<vmem>>, vector<16x32xf32>
      %c0_12 = arith.constant 0 : index
      %c0_13 = arith.constant 0 : index
      %13 = vector.load %arg5[%c0_12, %c0_13] : memref<1x32xf32, #tpu.memory_space<vmem>>, vector<1x32xf32>
      %14 = vector.broadcast %13 : vector<1x32xf32> to vector<16x32xf32>
      %15 = arith.addf %12, %14 : vector<16x32xf32>
      %c0_14 = arith.constant 0 : index
      %c0_15 = arith.constant 0 : index
      %16 = vector.load %arg6[%c0_14, %c0_15] : memref<16x32xf32, #tpu.memory_space<vmem>>, vector<16x32xf32>
      %17 = arith.addf %15, %16 : vector<16x32xf32>
      %cst_16 = arith.constant dense<0.000000e+00> : vector<16xf32>
      %18 = vector.multi_reduction <add>, %17, %cst_16 [1] : vector<16x32xf32> to vector<16xf32>
      %19 = vector.shape_cast %18 : vector<16xf32> to vector<16x1xf32>
      %cst_17 = arith.constant 3.200000e+01 : f32
      %20 = vector.broadcast %cst_17 : f32 to vector<16x1xf32>
      %21 = arith.divf %19, %20 : vector<16x1xf32>
      %22 = vector.broadcast %21 : vector<16x1xf32> to vector<16x32xf32>
      %23 = arith.subf %17, %22 : vector<16x32xf32>
      %24 = arith.mulf %23, %23 : vector<16x32xf32>
      %cst_18 = arith.constant dense<0.000000e+00> : vector<16xf32>
      %25 = vector.multi_reduction <add>, %24, %cst_18 [1] : vector<16x32xf32> to vector<16xf32>
      %26 = vector.shape_cast %25 : vector<16xf32> to vector<16x1xf32>
      %cst_19 = arith.constant 3.200000e+01 : f32
      %27 = vector.broadcast %cst_19 : f32 to vector<16x1xf32>
      %28 = arith.divf %26, %27 : vector<16x1xf32>
      %cst_20 = arith.constant 9.99999996E-13 : f32
      %29 = vector.broadcast %cst_20 : f32 to vector<16x1xf32>
      %30 = arith.addf %28, %29 : vector<16x1xf32>
      %31 = math.rsqrt %30 : vector<16x1xf32>
      %32 = vector.broadcast %31 : vector<16x1xf32> to vector<16x32xf32>
      %33 = arith.mulf %23, %32 : vector<16x32xf32>
      %c0_21 = arith.constant 0 : index
      %c0_22 = arith.constant 0 : index
      %34 = vector.load %arg7[%c0_21, %c0_22] : memref<1x32xf32, #tpu.memory_space<vmem>>, vector<1x32xf32>
      %35 = vector.broadcast %34 : vector<1x32xf32> to vector<16x32xf32>
      %36 = arith.mulf %33, %35 : vector<16x32xf32>
      %c0_23 = arith.constant 0 : index
      %c0_24 = arith.constant 0 : index
      %37 = vector.load %arg8[%c0_23, %c0_24] : memref<1x32xf32, #tpu.memory_space<vmem>>, vector<1x32xf32>
      %38 = vector.broadcast %37 : vector<1x32xf32> to vector<16x32xf32>
      %39 = arith.addf %36, %38 : vector<16x32xf32>
      %c0_25 = arith.constant 0 : index
      %c0_26 = arith.constant 0 : index
      %40 = vector.load %arg9[%c0_25, %c0_26] : memref<16x32xf32, #tpu.memory_space<vmem>>, vector<16x32xf32>
      tpu.vector_store %arg9[%c0_25, %c0_26], %39 {strides = array<i32>} : memref<16x32xf32, #tpu.memory_space<vmem>>, vector<16x32xf32>,
    } else {
    }
    return
  }
  func.func @transform_0(%arg0: i32, %arg1: i32, %arg2: i32) -> (i32, i32) {
    %c0_i32 = arith.constant 0 : i32
    return %arg0, %arg2 : i32, i32
  }
  func.func @transform_1(%arg0: i32, %arg1: i32, %arg2: i32) -> (i32, i32) {
    %c0_i32 = arith.constant 0 : i32
    %c0_i32_0 = arith.constant 0 : i32
    return %arg2, %c0_i32 : i32, i32
  }
  func.func @transform_2(%arg0: i32, %arg1: i32, %arg2: i32) -> (i32, i32) {
    %c0_i32 = arith.constant 0 : i32
    %c0_i32_0 = arith.constant 0 : i32
    %c0_i32_1 = arith.constant 0 : i32
    return %c0_i32, %c0_i32_0 : i32, i32
  }
  func.func @transform_3(%arg0: i32, %arg1: i32, %arg2: i32) -> (i32, i32) {
    %c0_i32 = arith.constant 0 : i32
    %c0_i32_0 = arith.constant 0 : i32
    return %arg0, %c0_i32 : i32, i32
  }
  func.func @transform_4(%arg0: i32, %arg1: i32, %arg2: i32) -> (i32, i32) {
    %c0_i32 = arith.constant 0 : i32
    %c0_i32_0 = arith.constant 0 : i32
    %c0_i32_1 = arith.constant 0 : i32
    return %c0_i32, %c0_i32_0 : i32, i32
  }
  func.func @transform_5(%arg0: i32, %arg1: i32, %arg2: i32) -> (i32, i32) {
    %c0_i32 = arith.constant 0 : i32
    %c0_i32_0 = arith.constant 0 : i32
    %c0_i32_1 = arith.constant 0 : i32
    return %c0_i32, %c0_i32_0 : i32, i32
  }
  func.func @transform_6(%arg0: i32, %arg1: i32, %arg2: i32) -> (i32, i32) {
    %c0_i32 = arith.constant 0 : i32
    %c0_i32_0 = arith.constant 0 : i32
    return %arg0, %c0_i32 : i32, i32
  }
}

</mosaic_0001>

<llo_original>
// kernel: _lambda_.12
$region0: #{_lambda_.12}
  #allocation0 [shape = 'u32[]', space=smem, size = 0x4, offset = 0x4, fixed_abs, tag = 'smem constant byte address 0x4 - core index']
  #allocation1 [shape = 'u32[72,128]{1,0:T(1,128)}', space=vmem, size = 0x9000, scoped, tag = 'internal scratch']
  %s0 = inlined_call_operand.vmem [shape: f32[16,32], index: 0, kind: input, shape index: {}]
  %s1 = inlined_call_operand.vmem [shape: f32[1,32], index: 1, kind: input, shape index: {}]
  %s2 = inlined_call_operand.vmem [shape: f32[1,32], index: 2, kind: input, shape index: {}]
  %s3 = inlined_call_operand.vmem [shape: f32[16,32], index: 3, kind: output, shape index: {}]
  %s4 = sld [smem:[#allocation0]]
  $region22: #{_lambda_.12} parent=0
    _
  %s6 = ssub.s32 1, %s4
  %s7 = scalar_select 0, %s6, %s4
  // Predicated region
  $region2: #{_lambda_.12} parent=0 // pred_check
    _
  $region3: #{_lambda_.12} parent=0 // pred_check_branch
    %9 = sbr.rel (0) target = $region5
  $region4: #{_lambda_.12} parent=0 // pred_region
    _
  $region5: #{_lambda_.12} parent=0 // pred_fallthru
    _
  // Predicated region
  $region6: #{_lambda_.12} parent=0 // pred_check
    _
  $region7: #{_lambda_.12} parent=0 // pred_check_branch
    %11 = sbr.rel (0) target = $region9
  $region8: #{_lambda_.12} parent=0 // pred_region
    _
  $region9: #{_lambda_.12} parent=0 // pred_fallthru
    _
  // Predicated region
  $region10: #{_lambda_.12} parent=0 // pred_check
    _
  $region11: #{_lambda_.12} parent=0 // pred_check_branch
    %13 = sbr.rel (0) target = $region13
  $region12: #{_lambda_.12} parent=0 // pred_region
    _
  $region13: #{_lambda_.12} parent=0 // pred_fallthru
    _
  %v14 = vld [vmem:[%s0] sm:$0xff]
  %v15 = vld [vmem:[%s0 + $0x8] sm:$0xff]
  %vm16 = vcmask 261120
  %v17 = vsel %vm16, %v14, 0.0
  %18 = vadd.xlane.f32.xlu0 %v17
  %v19 = vpop.xlane.xlu0 %18
  %v20 = vsel %vm16, %v15, 0.0
  %21 = vadd.xlane.f32.xlu0 %v20
  %v22 = vpop.xlane.xlu0 %21
  %v23 = vrcp.pop 32.0
  %v24 = vmul.f32 32.0, %v23
  %v25 = vsub.f32 1.0, %v24
  %v26 = vmul.f32 %v23, %v25
  %v27 = vadd.f32 %v23, %v26
  %vm28 = vweird.f32 %v23
  %v29 = vsel %vm28, %v23, %v27
  %v30 = vmul.f32 %v19, %v29
  %v31 = vmul.f32 %v22, %v29
  %v32 = vsub.f32 %v14, %v30
  %v33 = vsub.f32 %v15, %v31
  %v34 = vmul.f32 %v32, %v32
  %v35 = vmul.f32 %v33, %v33
  %v36 = vsel %vm16, %v34, 0.0
  %37 = vadd.xlane.f32.xlu0 %v36
  %v38 = vpop.xlane.xlu0 %37
  %v39 = vsel %vm16, %v35, 0.0
  %40 = vadd.xlane.f32.xlu0 %v39
  %v41 = vpop.xlane.xlu0 %40
  %v42 = vmul.f32 %v38, %v29
  %v43 = vmul.f32 %v41, %v29
  %v44 = vadd.f32 %v42, 1e-12
  %v45 = vadd.f32 %v43, 1e-12
  %v46 = vrsqrt.pop %v44
  %v47 = vmul.f32 %v46, %v44
  %v48 = vmul.f32 %v47, %v46
  %v49 = vmul.f32 0.5, %v48
  %v50 = vsub.f32 1.5, %v49
  %v51 = vmul.f32 %v46, %v50
  %vm52 = vweird.f32 %v44
  %vm53 = vweird.f32 %v46
  %vm54 = vmor %vm52, %vm53
  %v55 = vsel %vm54, %v46, %v51
  %v56 = vrsqrt.pop %v45
  %v57 = vmul.f32 %v56, %v45
  %v58 = vmul.f32 %v57, %v56
  %v59 = vmul.f32 0.5, %v58
  %v60 = vsub.f32 1.5, %v59
  %v61 = vmul.f32 %v56, %v60
  %vm62 = vweird.f32 %v45
  %vm63 = vweird.f32 %v56
  %vm64 = vmor %vm62, %vm63
  %v65 = vsel %vm64, %v56, %v61
  %v66 = vmul.f32 %v32, %v55
  %v67 = vmul.f32 %v33, %v65
  %v68 = vld [vmem:[%s1] sm:$0x1]
  %v70 = vperm.slane %v68, 0
  %v72 = vmul.f32 %v66, %v70
  %v73 = vmul.f32 %v67, %v70
  %v74 = vld [vmem:[%s2] sm:$0x1]
  %v76 = vperm.slane %v74, 0
  %v78 = vadd.f32 %v72, %v76
  %v79 = vadd.f32 %v73, %v76
  %80 = vst.msk [vmem:[%s3] sm:$0xff] %vm16, %v78
  %81 = vst.msk [vmem:[%s3 + $0x8] sm:$0xff] %vm16, %v79
  // Predicated region
  $region14: #{_lambda_.12} parent=0 // pred_check
    _
  $region15: #{_lambda_.12} parent=0 // pred_check_branch
    %83 = sbr.rel (0) target = $region17
  $region16: #{_lambda_.12} parent=0 // pred_region
    _
  $region17: #{_lambda_.12} parent=0 // pred_fallthru
    _
  // Predicated region
  $region18: #{_lambda_.12} parent=0 // pred_check
    _
  $region19: #{_lambda_.12} parent=0 // pred_check_branch
    %85 = sbr.rel (0) target = $region21
  $region20: #{_lambda_.12} parent=0 // pred_region
    _
  $region21: #{_lambda_.12} parent=0 // pred_fallthru
    _

// kernel: _lambda_.14
$region0: #{_lambda_.14}
  #allocation0 [shape = 'u32[]', space=smem, size = 0x4, offset = 0x4, fixed_abs, tag = 'smem constant byte address 0x4 - core index']
  #allocation1 [shape = 'u32[72,128]{1,0:T(1,128)}', space=vmem, size = 0x9000, scoped, tag = 'internal scratch']
  %s0 = inlined_call_operand.vmem [shape: bf16[2,8,96], index: 0, kind: input, shape index: {}]
  %s1 = inlined_call_operand.vmem [shape: f32[2,1,8], index: 1, kind: input, shape index: {}]
  %s2 = inlined_call_operand.vmem [shape: f32[2,8,32], index: 2, kind: output, shape index: {}]
  %s3 = sld [smem:[#allocation0]]
  $region41: #{_lambda_.14} parent=0
    _
  %s5 = ssub.s32 1, %s3
  %s6 = scalar_select 0, %s5, %s3
  loop: start=0, step=1, limit=4
  $region2: #{_lambda_.14} parent=0 // loop_pre_header
    _
  $region3: #{_lambda_.14} parent=0 // loop_header
    %s8 = sphi 0, %s12
    %p9 = scmp.ge.s32.totalorder %s8, 4
    %s18 = sphi 0, %s20
    %s21 = sphi 0, %s18
    %s22 = sphi 0, %s21
    %s38 = sphi 0, %s22
    %s44 = sphi 0, %s46
    %s47 = sphi 0, %s44
    %s48 = sphi 0, %s47
    %s64 = sphi 0, %s48
    %s70 = sphi 0, %s72
    %s73 = sphi 0, %s70
    %s74 = sphi 0, %s73
    %s90 = sphi 0, %s74
  $region4: #{_lambda_.14} parent=0 // loop_header_branch
    %11 = sbr.rel (%p9) target = $region8
  $region5: #{_lambda_.14} parent=0 // loop_body
    %s13 = ssub.s32 %s8, 1
    %s14 = ssub.s32 %s8, 2
    %s15 = sadd.s32 %s8, 1
    %s16 = ssub.s32 %s8, %s15
    %p17 = scmp.eq.s32.totalorder %s16, 0
    %s19 = sadd.s32 %s18, 1
    %s20 = scalar_select %p17, %s18, %s19
    %p23 = pneg %p17
    %p24 = scmp.eq.s32.totalorder %s8, 1
    %p25 = por %p23, %p24
    %p26 = scmp.ne.s32.totalorder %s18, %s21
    %p27 = scmp.eq.s32.totalorder %s8, 0
    %p28 = por %p26, %p27
    %p29 = scmp.ne.s32.totalorder %s18, %s21
    %p30 = scmp.eq.s32.totalorder %s13, 1
    %p31 = por %p29, %p30
    %p32 = scmp.ne.s32.totalorder %s21, %s22
    %p33 = scmp.eq.s32.totalorder %s13, 0
    %p34 = por %p32, %p33
    %p35 = scmp.ne.s32.totalorder %s21, %s22
    %p36 = scmp.eq.s32.totalorder %s14, 1
    %p37 = por %p35, %p36
    %p39 = scmp.ne.s32.totalorder %s22, %s38
    %p40 = scmp.eq.s32.totalorder %s14, 0
    %p41 = por %p39, %p40
    %s42 = ssub.s32 %s8, %s15
    %p43 = scmp.eq.s32.totalorder %s42, 0
    %s45 = sadd.s32 %s44, 1
    %s46 = scalar_select %p43, %s44, %s45
    %p49 = pneg %p43
    %p50 = scmp.eq.s32.totalorder %s8, 1
    %p51 = por %p49, %p50
    %p52 = scmp.ne.s32.totalorder %s44, %s47
    %p53 = scmp.eq.s32.totalorder %s8, 0
    %p54 = por %p52, %p53
    %p55 = scmp.ne.s32.totalorder %s44, %s47
    %p56 = scmp.eq.s32.totalorder %s13, 1
    %p57 = por %p55, %p56
    %p58 = scmp.ne.s32.totalorder %s47, %s48
    %p59 = scmp.eq.s32.totalorder %s13, 0
    %p60 = por %p58, %p59
    %p61 = scmp.ne.s32.totalorder %s47, %s48
    %p62 = scmp.eq.s32.totalorder %s14, 1
    %p63 = por %p61, %p62
    %p65 = scmp.ne.s32.totalorder %s48, %s64
    %p66 = scmp.eq.s32.totalorder %s14, 0
    %p67 = por %p65, %p66
    %s68 = ssub.s32 %s8, %s15
    %p69 = scmp.eq.s32.totalorder %s68, 0
    %s71 = sadd.s32 %s70, 1
    %s72 = scalar_select %p69, %s70, %s71
    %p75 = pneg %p69
    %p76 = scmp.eq.s32.totalorder %s8, 1
    %p77 = por %p75, %p76
    %p78 = scmp.ne.s32.totalorder %s70, %s73
    %p79 = scmp.eq.s32.totalorder %s8, 0
    %p80 = por %p78, %p79
    %p81 = scmp.ne.s32.totalorder %s70, %s73
    %p82 = scmp.eq.s32.totalorder %s13, 1
    %p83 = por %p81, %p82
    %p84 = scmp.ne.s32.totalorder %s73, %s74
    %p85 = scmp.eq.s32.totalorder %s13, 0
    %p86 = por %p84, %p85
    %p87 = scmp.ne.s32.totalorder %s73, %s74
    %p88 = scmp.eq.s32.totalorder %s14, 1
    %p89 = por %p87, %p88
    %p91 = scmp.ne.s32.totalorder %s74, %s90
    %p92 = scmp.eq.s32.totalorder %s14, 0
    %p93 = por %p91, %p92
    %p94 = scmp.le.s32.totalorder 1, %s8
    %p95 = scmp.lt.s32.totalorder %s8, 3
    %p96 = pnand %p94, %p95
    %p97 = pneg %p96
    // Predicated region
    $region9: #{_lambda_.14} parent=5 // pred_check
      _
    $region10: #{_lambda_.14} parent=5 // pred_check_branch
      %99 = sbr.rel (%p96) target = $region12
    $region11: #{_lambda_.14} parent=5 // pred_region
      %s100 = ssub.s32 %s8, 1
    $region12: #{_lambda_.14} parent=5 // pred_fallthru
      _
    %p101 = scmp.lt.s32.totalorder %s8, 2
    // Predicated region
    $region13: #{_lambda_.14} parent=5 // pred_check
      %p102 = pneg %p101
    $region14: #{_lambda_.14} parent=5 // pred_check_branch
      %104 = sbr.rel (%p102) target = $region16
    $region15: #{_lambda_.14} parent=5 // pred_region
      // Predicated region
      $region17: #{_lambda_.14} parent=15 // pred_check
        %p105 = pneg %p28
      $region18: #{_lambda_.14} parent=15 // pred_check_branch
        %107 = sbr.rel (%p105) target = $region20
      $region19: #{_lambda_.14} parent=15 // pred_region
        %p108 = scmp.lt.s32.totalorder %s8, 1
        %s109 = scalar_select %p108, %s8, 1
        %s110 = smul.addr %s109, 4
        %s111 = scalar_lea.vmem %s0, %s110
      $region20: #{_lambda_.14} parent=15 // pred_fallthru
        _
      // Predicated region
      $region21: #{_lambda_.14} parent=15 // pred_check
        %p112 = pneg %p54
      $region22: #{_lambda_.14} parent=15 // pred_check_branch
        %114 = sbr.rel (%p112) target = $region24
      $region23: #{_lambda_.14} parent=15 // pred_region
        %p115 = scmp.lt.s32.totalorder %s8, 1
        %s116 = scalar_select %p115, %s8, 1
        %s117 = scalar_lea.vmem %s1, %s116
      $region24: #{_lambda_.14} parent=15 // pred_fallthru
        _
    $region16: #{_lambda_.14} parent=5 // pred_fallthru
      _
    %p118 = scmp.le.s32.totalorder 1, %s8
    %p119 = scmp.lt.s32.totalorder %s8, 3
    %p120 = pnand %p118, %p119
    %p121 = pneg %p120
    // Predicated region
    $region25: #{_lambda_.14} parent=5 // pred_check
      _
    $region26: #{_lambda_.14} parent=5 // pred_check_branch
      %123 = sbr.rel (%p120) target = $region28
    $region27: #{_lambda_.14} parent=5 // pred_region
      %s124 = ssub.s32 %s8, 1
      %p125 = scmp.lt.s32.totalorder %s13, 1
      %s126 = scalar_select %p125, %s13, 1
      %s127 = smul.addr %s126, 4
      %s128 = scalar_lea.vmem %s0, %s127
      %p129 = pneg %p34
      %p130 = pneg %p31
      %p131 = scmp.lt.s32.totalorder %s13, 1
      %s132 = scalar_select %p131, %s13, 1
      %s133 = scalar_lea.vmem %s1, %s132
      %p134 = pneg %p60
      %p135 = pneg %p57
      %p136 = pneg %p86
      %p137 = pneg %p83
      %p138 = scmp.lt.s32.totalorder %s13, 1
      %s139 = scalar_select %p138, %s13, 1
      %s140 = smul.addr %s139, 8
      %s141 = scalar_lea.vmem %s2, %s140
      %p142 = scmp.lt.s32.totalorder %s13, 1
      %s143 = scalar_select %p142, %s13, 1
      %s144 = smul.addr %s143, 4
      %s145 = scalar_lea.vmem %s0, %s144
      %p146 = scmp.lt.s32.totalorder %s13, 1
      %s147 = scalar_select %p146, %s13, 1
      %s148 = scalar_lea.vmem %s1, %s147
      %p149 = scmp.lt.s32.totalorder %s13, 1
      %s150 = scalar_select %p149, %s13, 1
      %s151 = smul.addr %s150, 8
      %s152 = scalar_lea.vmem %s2, %s151
      %v154 = vld [vmem:[%s145] sm:$0xf]
      %v155 = vld [vmem:[%s148] sm:$0x1]
      %v156 = vunpack.c.l.bf16 %v154
      %v157 = vmul.f32 %v156, 0.25
      %v158 = vpack.c.bf16 %v157, %v157
      %v160 = vperm.slane %v155, 0
      %v163 = vunpack.c.l.b16 %v154
      %v164 = vpack.c.b16 %v163, %v163
      %165 = vrot.lane.b32.xlu0 %v164, 96
      %v166 = vpop.permute.xlu0 %165
      %vm167 = vcmask 130048
      %v169 = vsel %vm167, %v158, 0
      %v172 = vsel %vm167, %v166, 0
      %174 = vmatpush.bf16.xpose.msra.mxu0 0
      %175 = vmatpush.bf16.xpose.msra.mxu0 0
      %176 = vmatpush.bf16.xpose.msra.mxu0 0
      %177 = vmatpush.bf16.xpose.msra.mxu0 0
      %178 = vmatpush.bf16.xpose.msra.mxu0 0
      %179 = vmatpush.bf16.xpose.msra.mxu0 0
      %180 = vmatpush.bf16.xpose.msra.mxu0 0
      %181 = vmatpush.bf16.xpose.msra.mxu0 %v172
      %182 = vmatmul.bf16.gmra.mxu0 %v169
      %v183 = vpop.f32.mrf.mxu0
      %v184 = vadd.f32 %v160, %v183
      %v185 = vpop.f32.mrf.mxu0
      %186 = vdwg.mxu0
      %vm187 = vcmask 64512
      %v188 = vsel %vm187, %v184, -inf
      %189 = vmax.xlane.f32.xlu0 %v188
      %v190 = vpop.xlane.xlu0 %189
      %v191 = vsub.f32 %v184, %v190
      %v192 = vmul.f32 %v191, 1.442695
      %v193 = vpow.pop %v192
      %v194 = vsel %vm187, %v193, 0.0
      %195 = vadd.xlane.f32.xlu0 %v194
      %v196 = vpop.xlane.xlu0 %195
      %v197 = vrcp.pop %v196
      %v198 = vpack.c.bf16 %v193, %v193
      %199 = vrot.lane.b32.xlu0 %v164, 64
      %v200 = vpop.permute.xlu0 %199
      %v202 = vsel %vm187, %v198, 0
      %vm204 = vcmask 1043456
      %v206 = vsel %vm204, %v200, 0
      %208 = vmatpush.bf16.msra.mxu0 0
      %209 = vmatpush.bf16.msra.mxu0 0
      %210 = vmatpush.bf16.msra.mxu0 0
      %211 = vmatpush.bf16.msra.mxu0 0
      %212 = vmatpush.bf16.msra.mxu0 0
      %213 = vmatpush.bf16.msra.mxu0 0
      %214 = vmatpush.bf16.msra.mxu0 0
      %215 = vmatpush.bf16.msra.mxu0 %v206
      %216 = vmatmul.bf16.gmra.mxu0 %v202
      %v217 = vpop.f32.mrf.mxu0
      %v218 = vadd.f32 0.0, %v217
      %v219 = vpop.f32.mrf.mxu0
      %220 = vdwg.mxu0
      %v221 = vmul.f32 %v218, %v197
      %223 = vrot.lane.b32.xlu0 %v158, 112
      %v224 = vpop.permute.xlu0 %223
      %225 = vrot.lane.b32.xlu0 %v164, 80
      %v226 = vpop.permute.xlu0 %225
      %v228 = vsel %vm167, %v224, 0
      %v231 = vsel %vm167, %v226, 0
      %233 = vmatpush.bf16.xpose.msra.mxu0 0
      %234 = vmatpush.bf16.xpose.msra.mxu0 0
      %235 = vmatpush.bf16.xpose.msra.mxu0 0
      %236 = vmatpush.bf16.xpose.msra.mxu0 0
      %237 = vmatpush.bf16.xpose.msra.mxu0 0
      %238 = vmatpush.bf16.xpose.msra.mxu0 0
      %239 = vmatpush.bf16.xpose.msra.mxu0 0
      %240 = vmatpush.bf16.xpose.msra.mxu0 %v231
      %241 = vmatmul.bf16.gmra.mxu0 %v228
      %v242 = vpop.f32.mrf.mxu0
      %v243 = vadd.f32 %v160, %v242
      %v244 = vpop.f32.mrf.mxu0
      %245 = vdwg.mxu0
      %v246 = vsel %vm187, %v243, -inf
      %247 = vmax.xlane.f32.xlu0 %v246
      %v248 = vpop.xlane.xlu0 %247
      %v249 = vsub.f32 %v243, %v248
      %v250 = vmul.f32 %v249, 1.442695
      %v251 = vpow.pop %v250
      %v252 = vsel %vm187, %v251, 0.0
      %253 = vadd.xlane.f32.xlu0 %v252
      %v254 = vpop.xlane.xlu0 %253
      %v255 = vrcp.pop %v254
      %v256 = vpack.c.bf16 %v251, %v251
      %257 = vrot.lane.b32.xlu0 %v164, 48
      %v258 = vpop.permute.xlu0 %257
      %v260 = vsel %vm187, %v256, 0
      %v263 = vsel %vm204, %v258, 0
      %265 = vmatpush.bf16.msra.mxu0 0
      %266 = vmatpush.bf16.msra.mxu0 0
      %267 = vmatpush.bf16.msra.mxu0 0
      %268 = vmatpush.bf16.msra.mxu0 0
      %269 = vmatpush.bf16.msra.mxu0 0
      %270 = vmatpush.bf16.msra.mxu0 0
      %271 = vmatpush.bf16.msra.mxu0 0
      %272 = vmatpush.bf16.msra.mxu0 %v263
      %273 = vmatmul.bf16.gmra.mxu0 %v260
      %v274 = vpop.f32.mrf.mxu0
      %v275 = vadd.f32 0.0, %v274
      %v276 = vpop.f32.mrf.mxu0
      %277 = vdwg.mxu0
      %v278 = vmul.f32 %v275, %v255
      %280 = vrot.lane.b32.xlu0 %v278, 16
      %v281 = vpop.permute.xlu0 %280
      %v283 = vsel %vm167, %v221, %v281
      %vm284 = vcmask 261120
      %285 = vst.msk [vmem:[%s152] sm:$0xff] %vm284, %v283
      %p286 = scmp.lt.s32.totalorder %s13, 1
      %s287 = scalar_select %p286, %s13, 1
      %s288 = smul.addr %s287, 8
      %s289 = scalar_lea.vmem %s2, %s288
      // Predicated region
      $region29: #{_lambda_.14} parent=27 // pred_check
        %p290 = pneg %p83
      $region30: #{_lambda_.14} parent=27 // pred_check_branch
        %292 = sbr.rel (%p290) target = $region32
      $region31: #{_lambda_.14} parent=27 // pred_region
        _
      $region32: #{_lambda_.14} parent=27 // pred_fallthru
        _
    $region28: #{_lambda_.14} parent=5 // pred_fallthru
      _
    %p293 = scmp.le.s32.totalorder 2, %s8
    // Predicated region
    $region33: #{_lambda_.14} parent=5 // pred_check
      %p294 = pneg %p293
    $region34: #{_lambda_.14} parent=5 // pred_check_branch
      %296 = sbr.rel (%p294) target = $region36
    $region35: #{_lambda_.14} parent=5 // pred_region
      %s297 = ssub.s32 %s8, 2
      // Predicated region
      $region37: #{_lambda_.14} parent=35 // pred_check
        %p298 = pneg %p89
      $region38: #{_lambda_.14} parent=35 // pred_check_branch
        %300 = sbr.rel (%p298) target = $region40
      $region39: #{_lambda_.14} parent=35 // pred_region
        %p301 = scmp.lt.s32.totalorder %s14, 1
        %s302 = scalar_select %p301, %s14, 1
        %s303 = smul.addr %s302, 8
        %s304 = scalar_lea.vmem %s2, %s303
      $region40: #{_lambda_.14} parent=35 // pred_fallthru
        _
    $region36: #{_lambda_.14} parent=5 // pred_fallthru
      _
  $region6: #{_lambda_.14} parent=0 // loop_footer
    %s12 = sadd.s32 1, %s8
  $region7: #{_lambda_.14} parent=0 // loop_footer_branch
    %7 = sbr.rel target = $region3
  $region8: #{_lambda_.14} parent=0 // loop_exit
    _

// kernel: _lambda_.15
$region0: #{_lambda_.15}
  #allocation0 [shape = 'u32[]', space=smem, size = 0x4, offset = 0x4, fixed_abs, tag = 'smem constant byte address 0x4 - core index']
  #allocation1 [shape = 'u32[72,128]{1,0:T(1,128)}', space=vmem, size = 0x9000, scoped, tag = 'internal scratch']
  #allocation2 [shape = 'f32[16,32]{1,0:T(8,128)}', space=vmem, size = 0x2000, scoped, tag = 'scratch operand']
  %s0 = inlined_call_operand.vmem [shape: bf16[16,32], index: 0, kind: input, shape index: {}]
  %s1 = inlined_call_operand.vmem [shape: bf16[32,32], index: 1, kind: input, shape index: {}]
  %s2 = inlined_call_operand.vmem [shape: f32[1,32], index: 2, kind: input, shape index: {}, may-alias: {2,5}]
  %s3 = inlined_call_operand.vmem [shape: f32[16,32], index: 3, kind: input, shape index: {}]
  %s4 = inlined_call_operand.vmem [shape: f32[1,32], index: 4, kind: input, shape index: {}]
  %s5 = inlined_call_operand.vmem [shape: f32[1,32], index: 5, kind: input, shape index: {}, may-alias: {2,5}]
  %s6 = inlined_call_operand.vmem [shape: f32[16,32], index: 6, kind: output, shape index: {}]
  %s7 = sld [smem:[#allocation0]]
  $region42: #{_lambda_.15} parent=0
    _
  %s9 = ssub.s32 1, %s7
  %s10 = scalar_select 0, %s9, %s7
  // Predicated region
  $region2: #{_lambda_.15} parent=0 // pred_check
    _
  $region3: #{_lambda_.15} parent=0 // pred_check_branch
    %12 = sbr.rel (0) target = $region5
  $region4: #{_lambda_.15} parent=0 // pred_region
    _
  $region5: #{_lambda_.15} parent=0 // pred_fallthru
    _
  // Predicated region
  $region6: #{_lambda_.15} parent=0 // pred_check
    _
  $region7: #{_lambda_.15} parent=0 // pred_check_branch
    %14 = sbr.rel (0) target = $region9
  $region8: #{_lambda_.15} parent=0 // pred_region
    _
  $region9: #{_lambda_.15} parent=0 // pred_fallthru
    _
  // Predicated region
  $region10: #{_lambda_.15} parent=0 // pred_check
    _
  $region11: #{_lambda_.15} parent=0 // pred_check_branch
    %16 = sbr.rel (0) target = $region13
  $region12: #{_lambda_.15} parent=0 // pred_region
    _
  $region13: #{_lambda_.15} parent=0 // pred_fallthru
    _
  // Predicated region
  $region14: #{_lambda_.15} parent=0 // pred_check
    _
  $region15: #{_lambda_.15} parent=0 // pred_check_branch
    %18 = sbr.rel (0) target = $region17
  $region16: #{_lambda_.15} parent=0 // pred_region
    _
  $region17: #{_lambda_.15} parent=0 // pred_fallthru
    _
  // Predicated region
  $region18: #{_lambda_.15} parent=0 // pred_check
    _
  $region19: #{_lambda_.15} parent=0 // pred_check_branch
    %20 = sbr.rel (0) target = $region21
  $region20: #{_lambda_.15} parent=0 // pred_region
    _
  $region21: #{_lambda_.15} parent=0 // pred_fallthru
    _
  // Predicated region
  $region22: #{_lambda_.15} parent=0 // pred_check
    _
  $region23: #{_lambda_.15} parent=0 // pred_check_branch
    %22 = sbr.rel (0) target = $region25
  $region24: #{_lambda_.15} parent=0 // pred_region
    _
  $region25: #{_lambda_.15} parent=0 // pred_fallthru
    _
  %p24 = scmp.eq.s32.totalorder 0, 0
  // Predicated region
  $region26: #{_lambda_.15} parent=0 // pred_check
    %p25 = pneg %p24
  $region27: #{_lambda_.15} parent=0 // pred_check_branch
    %27 = sbr.rel (%p25) target = $region29
  $region28: #{_lambda_.15} parent=0 // pred_region
    %vm28 = vcmask 261120
    %29 = vst.msk [vmem:[#allocation2] sm:$0xff] %vm28, 0.0
    %30 = vst.msk [vmem:[#allocation2 + $0x8] sm:$0xff] %vm28, 0.0
  $region29: #{_lambda_.15} parent=0 // pred_fallthru
    _
  %v31 = vld [vmem:[#allocation2] sm:$0xff]
  %v32 = vld [vmem:[#allocation2 + $0x8] sm:$0xff]
  %v33 = vld [vmem:[%s0] sm:$0xf]
  %v34 = vld [vmem:[%s0 + $0x4] sm:$0xf]
  %v35 = vld [vmem:[%s1] sm:$0xf]
  %v36 = vld [vmem:[%s1 + $0x4] sm:$0xf]
  %v37 = vld [vmem:[%s1 + $0x8] sm:$0xf]
  %v38 = vld [vmem:[%s1 + $0xc] sm:$0xf]
  %v41 = vunpack.c.l.b16 %v33
  %v42 = vunpack.c.l.b16 %v34
  %v43 = vpack.c.b16 %v42, %v41
  %v48 = vunpack.c.l.b16 %v35
  %v49 = vunpack.c.l.b16 %v36
  %v50 = vunpack.c.l.b16 %v37
  %v51 = vunpack.c.l.b16 %v38
  %v52 = vpack.c.b16 %v49, %v48
  %v53 = vpack.c.b16 %v51, %v50
  %vm56 = vcmask 261120
  %v58 = vsel %vm56, %v43, 0
  %60 = vmatpush.bf16.msra.mxu0 0
  %61 = vmatpush.bf16.msra.mxu0 0
  %62 = vmatpush.bf16.msra.mxu0 0
  %63 = vmatpush.bf16.msra.mxu0 0
  %64 = vmatpush.bf16.msra.mxu0 0
  %65 = vmatpush.bf16.msra.mxu0 0
  %66 = vmatpush.bf16.msra.mxu0 %v53
  %67 = vmatpush.bf16.msra.mxu0 %v52
  %68 = vmatmul.bf16.gmra.mxu0 %v58
  %v69 = vpop.f32.mrf.mxu0
  %v70 = vadd.f32 0.0, %v69
  %v71 = vpop.f32.mrf.mxu0
  %v72 = vadd.f32 0.0, %v71
  %73 = vdwg.mxu0
  %v74 = vadd.f32 %v31, %v70
  %v75 = vadd.f32 %v32, %v72
  %76 = vst.msk [vmem:[#allocation2] sm:$0xff] %vm56, %v74
  %77 = vst.msk [vmem:[#allocation2 + $0x8] sm:$0xff] %vm56, %v75
  // Predicated region
  $region30: #{_lambda_.15} parent=0 // pred_check
    %p78 = pneg %p24
  $region31: #{_lambda_.15} parent=0 // pred_check_branch
    %80 = sbr.rel (%p78) target = $region33
  $region32: #{_lambda_.15} parent=0 // pred_region
    %v81 = vld [vmem:[#allocation2] sm:$0xff]
    %v82 = vld [vmem:[#allocation2 + $0x8] sm:$0xff]
    %v83 = vld [vmem:[%s2] sm:$0x1]
    %v85 = vperm.slane %v83, 0
    %v87 = vadd.f32 %v81, %v85
    %v88 = vadd.f32 %v82, %v85
    %v89 = vld [vmem:[%s3] sm:$0xff]
    %v90 = vld [vmem:[%s3 + $0x8] sm:$0xff]
    %v91 = vadd.f32 %v87, %v89
    %v92 = vadd.f32 %v88, %v90
    %v93 = vsel %vm56, %v91, 0.0
    %94 = vadd.xlane.f32.xlu0 %v93
    %v95 = vpop.xlane.xlu0 %94
    %v96 = vsel %vm56, %v92, 0.0
    %97 = vadd.xlane.f32.xlu0 %v96
    %v98 = vpop.xlane.xlu0 %97
    %v99 = vrcp.pop 32.0
    %v100 = vmul.f32 32.0, %v99
    %v101 = vsub.f32 1.0, %v100
    %v102 = vmul.f32 %v99, %v101
    %v103 = vadd.f32 %v99, %v102
    %vm104 = vweird.f32 %v99
    %v105 = vsel %vm104, %v99, %v103
    %v106 = vmul.f32 %v95, %v105
    %v107 = vmul.f32 %v98, %v105
    %v108 = vsub.f32 %v91, %v106
    %v109 = vsub.f32 %v92, %v107
    %v110 = vmul.f32 %v108, %v108
    %v111 = vmul.f32 %v109, %v109
    %v112 = vsel %vm56, %v110, 0.0
    %113 = vadd.xlane.f32.xlu0 %v112
    %v114 = vpop.xlane.xlu0 %113
    %v115 = vsel %vm56, %v111, 0.0
    %116 = vadd.xlane.f32.xlu0 %v115
    %v117 = vpop.xlane.xlu0 %116
    %v118 = vmul.f32 %v114, %v105
    %v119 = vmul.f32 %v117, %v105
    %v120 = vadd.f32 %v118, 1e-12
    %v121 = vadd.f32 %v119, 1e-12
    %v122 = vrsqrt.pop %v120
    %v123 = vmul.f32 %v122, %v120
    %v124 = vmul.f32 %v123, %v122
    %v125 = vmul.f32 0.5, %v124
    %v126 = vsub.f32 1.5, %v125
    %v127 = vmul.f32 %v122, %v126
    %vm128 = vweird.f32 %v120
    %vm129 = vweird.f32 %v122
    %vm130 = vmor %vm128, %vm129
    %v131 = vsel %vm130, %v122, %v127
    %v132 = vrsqrt.pop %v121
    %v133 = vmul.f32 %v132, %v121
    %v134 = vmul.f32 %v133, %v132
    %v135 = vmul.f32 0.5, %v134
    %v136 = vsub.f32 1.5, %v135
    %v137 = vmul.f32 %v132, %v136
    %vm138 = vweird.f32 %v121
    %vm139 = vweird.f32 %v132
    %vm140 = vmor %vm138, %vm139
    %v141 = vsel %vm140, %v132, %v137
    %v142 = vmul.f32 %v108, %v131
    %v143 = vmul.f32 %v109, %v141
    %v144 = vld [vmem:[%s4] sm:$0x1]
    %v146 = vperm.slane %v144, 0
    %v148 = vmul.f32 %v142, %v146
    %v149 = vmul.f32 %v143, %v146
    %v150 = vld [vmem:[%s5] sm:$0x1]
    %v152 = vperm.slane %v150, 0
    %v154 = vadd.f32 %v148, %v152
    %v155 = vadd.f32 %v149, %v152
    %156 = vst.msk [vmem:[%s6] sm:$0xff] %vm56, %v154
    %157 = vst.msk [vmem:[%s6 + $0x8] sm:$0xff] %vm56, %v155
  $region33: #{_lambda_.15} parent=0 // pred_fallthru
    _
  // Predicated region
  $region34: #{_lambda_.15} parent=0 // pred_check
    _
  $region35: #{_lambda_.15} parent=0 // pred_check_branch
    %159 = sbr.rel (0) target = $region37
  $region36: #{_lambda_.15} parent=0 // pred_region
    _
  $region37: #{_lambda_.15} parent=0 // pred_fallthru
    _
  // Predicated region
  $region38: #{_lambda_.15} parent=0 // pred_check
    _
  $region39: #{_lambda_.15} parent=0 // pred_check_branch
    %161 = sbr.rel (0) target = $region41
  $region40: #{_lambda_.15} parent=0 // pred_region
    _
  $region41: #{_lambda_.15} parent=0 // pred_fallthru
    _

// kernel: _lambda_.13
$region0: #{_lambda_.13}
  #allocation0 [shape = 'u32[]', space=smem, size = 0x4, offset = 0x4, fixed_abs, tag = 'smem constant byte address 0x4 - core index']
  #allocation1 [shape = 'u32[72,128]{1,0:T(1,128)}', space=vmem, size = 0x9000, scoped, tag = 'internal scratch']
  #allocation2 [shape = 'f32[16,96]{1,0:T(8,128)}', space=vmem, size = 0x2000, scoped, tag = 'scratch operand']
  %s0 = inlined_call_operand.vmem [shape: bf16[16,32], index: 0, kind: input, shape index: {}]
  %s1 = inlined_call_operand.vmem [shape: bf16[32,96], index: 1, kind: input, shape index: {}]
  %s2 = inlined_call_operand.vmem [shape: f32[1,96], index: 2, kind: input, shape index: {}]
  %s3 = inlined_call_operand.vmem [shape: f32[16,96], index: 3, kind: output, shape index: {}]
  %s4 = sld [smem:[#allocation0]]
  $region30: #{_lambda_.13} parent=0
    _
  %s6 = ssub.s32 1, %s4
  %s7 = scalar_select 0, %s6, %s4
  // Predicated region
  $region2: #{_lambda_.13} parent=0 // pred_check
    _
  $region3: #{_lambda_.13} parent=0 // pred_check_branch
    %9 = sbr.rel (0) target = $region5
  $region4: #{_lambda_.13} parent=0 // pred_region
    _
  $region5: #{_lambda_.13} parent=0 // pred_fallthru
    _
  // Predicated region
  $region6: #{_lambda_.13} parent=0 // pred_check
    _
  $region7: #{_lambda_.13} parent=0 // pred_check_branch
    %11 = sbr.rel (0) target = $region9
  $region8: #{_lambda_.13} parent=0 // pred_region
    _
  $region9: #{_lambda_.13} parent=0 // pred_fallthru
    _
  // Predicated region
  $region10: #{_lambda_.13} parent=0 // pred_check
    _
  $region11: #{_lambda_.13} parent=0 // pred_check_branch
    %13 = sbr.rel (0) target = $region13
  $region12: #{_lambda_.13} parent=0 // pred_region
    _
  $region13: #{_lambda_.13} parent=0 // pred_fallthru
    _
  %p15 = scmp.eq.s32.totalorder 0, 0
  // Predicated region
  $region14: #{_lambda_.13} parent=0 // pred_check
    %p16 = pneg %p15
  $region15: #{_lambda_.13} parent=0 // pred_check_branch
    %18 = sbr.rel (%p16) target = $region17
  $region16: #{_lambda_.13} parent=0 // pred_region
    %vm19 = vcmask 785408
    %20 = vst.msk [vmem:[#allocation2] sm:$0xff] %vm19, 0.0
    %21 = vst.msk [vmem:[#allocation2 + $0x8] sm:$0xff] %vm19, 0.0
  $region17: #{_lambda_.13} parent=0 // pred_fallthru
    _
  %v22 = vld [vmem:[#allocation2] sm:$0xff]
  %v23 = vld [vmem:[#allocation2 + $0x8] sm:$0xff]
  %v24 = vld [vmem:[%s0] sm:$0xf]
  %v25 = vld [vmem:[%s0 + $0x4] sm:$0xf]
  %v26 = vld [vmem:[%s1] sm:$0xf]
  %v27 = vld [vmem:[%s1 + $0x4] sm:$0xf]
  %v28 = vld [vmem:[%s1 + $0x8] sm:$0xf]
  %v29 = vld [vmem:[%s1 + $0xc] sm:$0xf]
  %v32 = vunpack.c.l.b16 %v24
  %v33 = vunpack.c.l.b16 %v25
  %v34 = vpack.c.b16 %v33, %v32
  %v39 = vunpack.c.l.b16 %v26
  %v40 = vunpack.c.l.b16 %v27
  %v41 = vunpack.c.l.b16 %v28
  %v42 = vunpack.c.l.b16 %v29
  %v43 = vpack.c.b16 %v40, %v39
  %v44 = vpack.c.b16 %v42, %v41
  %vm47 = vcmask 261120
  %v49 = vsel %vm47, %v34, 0
  %51 = vmatpush.bf16.msra.mxu0 0
  %52 = vmatpush.bf16.msra.mxu0 0
  %53 = vmatpush.bf16.msra.mxu0 0
  %54 = vmatpush.bf16.msra.mxu0 0
  %55 = vmatpush.bf16.msra.mxu0 0
  %56 = vmatpush.bf16.msra.mxu0 0
  %57 = vmatpush.bf16.msra.mxu0 %v44
  %58 = vmatpush.bf16.msra.mxu0 %v43
  %59 = vmatmul.bf16.gmra.mxu0 %v49
  %v60 = vpop.f32.mrf.mxu0
  %v61 = vadd.f32 0.0, %v60
  %v62 = vpop.f32.mrf.mxu0
  %v63 = vadd.f32 0.0, %v62
  %64 = vdwg.mxu0
  %v65 = vadd.f32 %v22, %v61
  %v66 = vadd.f32 %v23, %v63
  %vm67 = vcmask 785408
  %68 = vst.msk [vmem:[#allocation2] sm:$0xff] %vm67, %v65
  %69 = vst.msk [vmem:[#allocation2 + $0x8] sm:$0xff] %vm67, %v66
  // Predicated region
  $region18: #{_lambda_.13} parent=0 // pred_check
    %p70 = pneg %p15
  $region19: #{_lambda_.13} parent=0 // pred_check_branch
    %72 = sbr.rel (%p70) target = $region21
  $region20: #{_lambda_.13} parent=0 // pred_region
    %v73 = vld [vmem:[#allocation2] sm:$0xff]
    %v74 = vld [vmem:[#allocation2 + $0x8] sm:$0xff]
    %v75 = vld [vmem:[%s2] sm:$0x1]
    %v77 = vperm.slane %v75, 0
    %v79 = vadd.f32 %v73, %v77
    %v80 = vadd.f32 %v74, %v77
    %81 = vst.msk [vmem:[%s3] sm:$0xff] %vm67, %v79
    %82 = vst.msk [vmem:[%s3 + $0x8] sm:$0xff] %vm67, %v80
  $region21: #{_lambda_.13} parent=0 // pred_fallthru
    _
  // Predicated region
  $region22: #{_lambda_.13} parent=0 // pred_check
    _
  $region23: #{_lambda_.13} parent=0 // pred_check_branch
    %84 = sbr.rel (0) target = $region25
  $region24: #{_lambda_.13} parent=0 // pred_region
    _
  $region25: #{_lambda_.13} parent=0 // pred_fallthru
    _
  // Predicated region
  $region26: #{_lambda_.13} parent=0 // pred_check
    _
  $region27: #{_lambda_.13} parent=0 // pred_check_branch
    %86 = sbr.rel (0) target = $region29
  $region28: #{_lambda_.13} parent=0 // pred_region
    _
  $region29: #{_lambda_.13} parent=0 // pred_fallthru
    _

// kernel: _lambda_.16
$region0: #{_lambda_.16}
  #allocation0 [shape = 'u32[]', space=smem, size = 0x4, offset = 0x4, fixed_abs, tag = 'smem constant byte address 0x4 - core index']
  #allocation1 [shape = 'u32[72,128]{1,0:T(1,128)}', space=vmem, size = 0x9000, scoped, tag = 'internal scratch']
  #allocation2 [shape = 'f32[16,64]{1,0:T(8,128)}', space=vmem, size = 0x2000, scoped, tag = 'scratch operand']
  %s0 = inlined_call_operand.vmem [shape: bf16[16,32], index: 0, kind: input, shape index: {}]
  %s1 = inlined_call_operand.vmem [shape: bf16[32,64], index: 1, kind: input, shape index: {}]
  %s2 = inlined_call_operand.vmem [shape: f32[1,64], index: 2, kind: input, shape index: {}]
  %s3 = inlined_call_operand.vmem [shape: f32[16,64], index: 3, kind: output, shape index: {}]
  %s4 = sld [smem:[#allocation0]]
  $region30: #{_lambda_.16} parent=0
    _
  %s6 = ssub.s32 1, %s4
  %s7 = scalar_select 0, %s6, %s4
  // Predicated region
  $region2: #{_lambda_.16} parent=0 // pred_check
    _
  $region3: #{_lambda_.16} parent=0 // pred_check_branch
    %9 = sbr.rel (0) target = $region5
  $region4: #{_lambda_.16} parent=0 // pred_region
    _
  $region5: #{_lambda_.16} parent=0 // pred_fallthru
    _
  // Predicated region
  $region6: #{_lambda_.16} parent=0 // pred_check
    _
  $region7: #{_lambda_.16} parent=0 // pred_check_branch
    %11 = sbr.rel (0) target = $region9
  $region8: #{_lambda_.16} parent=0 // pred_region
    _
  $region9: #{_lambda_.16} parent=0 // pred_fallthru
    _
  // Predicated region
  $region10: #{_lambda_.16} parent=0 // pred_check
    _
  $region11: #{_lambda_.16} parent=0 // pred_check_branch
    %13 = sbr.rel (0) target = $region13
  $region12: #{_lambda_.16} parent=0 // pred_region
    _
  $region13: #{_lambda_.16} parent=0 // pred_fallthru
    _
  %p15 = scmp.eq.s32.totalorder 0, 0
  // Predicated region
  $region14: #{_lambda_.16} parent=0 // pred_check
    %p16 = pneg %p15
  $region15: #{_lambda_.16} parent=0 // pred_check_branch
    %18 = sbr.rel (%p16) target = $region17
  $region16: #{_lambda_.16} parent=0 // pred_region
    %vm19 = vcmask 523264
    %20 = vst.msk [vmem:[#allocation2] sm:$0xff] %vm19, 0.0
    %21 = vst.msk [vmem:[#allocation2 + $0x8] sm:$0xff] %vm19, 0.0
  $region17: #{_lambda_.16} parent=0 // pred_fallthru
    _
  %v22 = vld [vmem:[#allocation2] sm:$0xff]
  %v23 = vld [vmem:[#allocation2 + $0x8] sm:$0xff]
  %v24 = vld [vmem:[%s0] sm:$0xf]
  %v25 = vld [vmem:[%s0 + $0x4] sm:$0xf]
  %v26 = vld [vmem:[%s1] sm:$0xf]
  %v27 = vld [vmem:[%s1 + $0x4] sm:$0xf]
  %v28 = vld [vmem:[%s1 + $0x8] sm:$0xf]
  %v29 = vld [vmem:[%s1 + $0xc] sm:$0xf]
  %v32 = vunpack.c.l.b16 %v24
  %v33 = vunpack.c.l.b16 %v25
  %v34 = vpack.c.b16 %v33, %v32
  %v39 = vunpack.c.l.b16 %v26
  %v40 = vunpack.c.l.b16 %v27
  %v41 = vunpack.c.l.b16 %v28
  %v42 = vunpack.c.l.b16 %v29
  %v43 = vpack.c.b16 %v40, %v39
  %v44 = vpack.c.b16 %v42, %v41
  %vm47 = vcmask 261120
  %v49 = vsel %vm47, %v34, 0
  %51 = vmatpush.bf16.msra.mxu0 0
  %52 = vmatpush.bf16.msra.mxu0 0
  %53 = vmatpush.bf16.msra.mxu0 0
  %54 = vmatpush.bf16.msra.mxu0 0
  %55 = vmatpush.bf16.msra.mxu0 0
  %56 = vmatpush.bf16.msra.mxu0 0
  %57 = vmatpush.bf16.msra.mxu0 %v44
  %58 = vmatpush.bf16.msra.mxu0 %v43
  %59 = vmatmul.bf16.gmra.mxu0 %v49
  %v60 = vpop.f32.mrf.mxu0
  %v61 = vadd.f32 0.0, %v60
  %v62 = vpop.f32.mrf.mxu0
  %v63 = vadd.f32 0.0, %v62
  %64 = vdwg.mxu0
  %v65 = vadd.f32 %v22, %v61
  %v66 = vadd.f32 %v23, %v63
  %vm67 = vcmask 523264
  %68 = vst.msk [vmem:[#allocation2] sm:$0xff] %vm67, %v65
  %69 = vst.msk [vmem:[#allocation2 + $0x8] sm:$0xff] %vm67, %v66
  // Predicated region
  $region18: #{_lambda_.16} parent=0 // pred_check
    %p70 = pneg %p15
  $region19: #{_lambda_.16} parent=0 // pred_check_branch
    %72 = sbr.rel (%p70) target = $region21
  $region20: #{_lambda_.16} parent=0 // pred_region
    %v73 = vld [vmem:[#allocation2] sm:$0xff]
    %v74 = vld [vmem:[#allocation2 + $0x8] sm:$0xff]
    %v75 = vld [vmem:[%s2] sm:$0x1]
    %v77 = vperm.slane %v75, 0
    %v79 = vadd.f32 %v73, %v77
    %v80 = vadd.f32 %v74, %v77
    %v81 = vmul.f32 %v79, 0.5
    %v82 = vmul.f32 %v80, 0.5
    %v83 = vmul.f32 %v79, 0.044715
    %v84 = vmul.f32 %v80, 0.044715
    %v85 = vmul.f32 %v83, %v79
    %v86 = vmul.f32 %v84, %v80
    %v87 = vmul.f32 %v85, %v79
    %v88 = vmul.f32 %v86, %v80
    %v89 = vadd.f32 %v79, %v87
    %v90 = vadd.f32 %v80, %v88
    %v91 = vmul.f32 %v89, 0.7978846
    %v92 = vmul.f32 %v90, 0.7978846
    %v93 = vtanh.pop %v91
    %v94 = vtanh.pop %v92
    %v95 = vadd.f32 %v93, 1.0
    %v96 = vadd.f32 %v94, 1.0
    %v97 = vmul.f32 %v81, %v95
    %v98 = vmul.f32 %v82, %v96
    %99 = vst.msk [vmem:[%s3] sm:$0xff] %vm67, %v97
    %100 = vst.msk [vmem:[%s3 + $0x8] sm:$0xff] %vm67, %v98
  $region21: #{_lambda_.16} parent=0 // pred_fallthru
    _
  // Predicated region
  $region22: #{_lambda_.16} parent=0 // pred_check
    _
  $region23: #{_lambda_.16} parent=0 // pred_check_branch
    %102 = sbr.rel (0) target = $region25
  $region24: #{_lambda_.16} parent=0 // pred_region
    _
  $region25: #{_lambda_.16} parent=0 // pred_fallthru
    _
  // Predicated region
  $region26: #{_lambda_.16} parent=0 // pred_check
    _
  $region27: #{_lambda_.16} parent=0 // pred_check_branch
    %104 = sbr.rel (0) target = $region29
  $region28: #{_lambda_.16} parent=0 // pred_region
    _
  $region29: #{_lambda_.16} parent=0 // pred_fallthru
    _

// kernel: _lambda_.23
$region0: #{_lambda_.23}
  #allocation0 [shape = 'u32[]', space=smem, size = 0x4, offset = 0x4, fixed_abs, tag = 'smem constant byte address 0x4 - core index']
  #allocation1 [shape = 'u32[72,128]{1,0:T(1,128)}', space=vmem, size = 0x9000, scoped, tag = 'internal scratch']
  #allocation2 [shape = 'f32[2,32]{1,0:T(2,128)}', space=vmem, size = 0x400, scoped, tag = 'scratch operand']
  %s0 = inlined_call_operand.vmem [shape: bf16[2,32], index: 0, kind: input, shape index: {}]
  %s1 = inlined_call_operand.vmem [shape: bf16[32,32], index: 1, kind: input, shape index: {}]
  %s2 = inlined_call_operand.vmem [shape: f32[1,32], index: 2, kind: input, shape index: {}]
  %s3 = inlined_call_operand.hbm [shape: f32[2,32], index: 3, kind: output, shape index: {}]
  %s4 = sld [smem:[#allocation0]]
  $region30: #{_lambda_.23} parent=0
    _
  %s6 = ssub.s32 1, %s4
  %s7 = scalar_select 0, %s6, %s4
  $region1: #{_lambda_.23} parent=0
    #allocation3 [shape = 'u8[1024]{0}', space=vmem, size = 0x400, scoped, tag = 'output window, operand 0, single buffered']
    #allocation4 [shape = 's32[1]{0}', space=sflag, size = 0x4, scoped, tag = 'scoped memory for _lambda_.23']
    %8 = vsyncpa [#allocation4], 0
    // Predicated region
    $region2: #{_lambda_.23} parent=1 // pred_check
      _
    $region3: #{_lambda_.23} parent=1 // pred_check_branch
      %10 = sbr.rel (0) target = $region5
    $region4: #{_lambda_.23} parent=1 // pred_region
      _
    $region5: #{_lambda_.23} parent=1 // pred_fallthru
      _
    // Predicated region
    $region6: #{_lambda_.23} parent=1 // pred_check
      _
    $region7: #{_lambda_.23} parent=1 // pred_check_branch
      %12 = sbr.rel (0) target = $region9
    $region8: #{_lambda_.23} parent=1 // pred_region
      _
    $region9: #{_lambda_.23} parent=1 // pred_fallthru
      _
    // Predicated region
    $region10: #{_lambda_.23} parent=1 // pred_check
      _
    $region11: #{_lambda_.23} parent=1 // pred_check_branch
      %14 = sbr.rel (0) target = $region13
    $region12: #{_lambda_.23} parent=1 // pred_region
      _
    $region13: #{_lambda_.23} parent=1 // pred_fallthru
      _
    %p16 = scmp.eq.s32.totalorder 0, 0
    // Predicated region
    $region14: #{_lambda_.23} parent=1 // pred_check
      %p17 = pneg %p16
    $region15: #{_lambda_.23} parent=1 // pred_check_branch
      %19 = sbr.rel (%p17) target = $region17
    $region16: #{_lambda_.23} parent=1 // pred_region
      %vm20 = vcmask 254976
      %21 = vst.msk [vmem:[#allocation2] sm:$0x3] %vm20, 0.0
    $region17: #{_lambda_.23} parent=1 // pred_fallthru
      _
    %v22 = vld [vmem:[#allocation2] sm:$0x3]
    %v23 = vld [vmem:[%s0] sm:$0x1]
    %v24 = vld [vmem:[%s1] sm:$0xf]
    %v25 = vld [vmem:[%s1 + $0x4] sm:$0xf]
    %v26 = vld [vmem:[%s1 + $0x8] sm:$0xf]
    %v27 = vld [vmem:[%s1 + $0xc] sm:$0xf]
    %v32 = vunpack.c.l.b16 %v24
    %v33 = vunpack.c.l.b16 %v25
    %v34 = vunpack.c.l.b16 %v26
    %v35 = vunpack.c.l.b16 %v27
    %v36 = vpack.c.b16 %v33, %v32
    %v37 = vpack.c.b16 %v35, %v34
    %vm40 = vcmask 261120
    %v42 = vsel %vm40, %v23, 0
    %44 = vmatpush.bf16.msra.mxu0 0
    %45 = vmatpush.bf16.msra.mxu0 0
    %46 = vmatpush.bf16.msra.mxu0 0
    %47 = vmatpush.bf16.msra.mxu0 0
    %48 = vmatpush.bf16.msra.mxu0 0
    %49 = vmatpush.bf16.msra.mxu0 0
    %50 = vmatpush.bf16.msra.mxu0 %v37
    %51 = vmatpush.bf16.msra.mxu0 %v36
    %52 = vmatmul.bf16.gmra.mxu0 %v42
    %v53 = vpop.f32.mrf.mxu0
    %v54 = vadd.f32 0.0, %v53
    %v55 = vpop.f32.mrf.mxu0
    %56 = vdwg.mxu0
    %v57 = vadd.f32 %v22, %v54
    %vm58 = vcmask 254976
    %59 = vst.msk [vmem:[#allocation2] sm:$0x3] %vm58, %v57
    // Predicated region
    $region18: #{_lambda_.23} parent=1 // pred_check
      %p60 = pneg %p16
    $region19: #{_lambda_.23} parent=1 // pred_check_branch
      %62 = sbr.rel (%p60) target = $region21
    $region20: #{_lambda_.23} parent=1 // pred_region
      %v63 = vld [vmem:[#allocation2] sm:$0x3]
      %v64 = vld [vmem:[%s2] sm:$0x1]
      %v66 = vperm.slane %v64, 0
      %v68 = vadd.f32 %v63, %v66
      %v69 = vtanh.pop %v68
      %70 = vst.msk [vmem:[#allocation3] sm:$0x3] %vm58, %v69
    $region21: #{_lambda_.23} parent=1 // pred_fallthru
      _
    // Predicated region
    $region22: #{_lambda_.23} parent=1 // pred_check
      _
    $region23: #{_lambda_.23} parent=1 // pred_check_branch
      %72 = sbr.rel (0) target = $region25
    $region24: #{_lambda_.23} parent=1 // pred_region
      %74 = vsyncadd [#allocation4], 0
      %s76 = sshll.u32 [#allocation3], 4
      %s77 = int_to_ptr.vmem [resolvable:$true] %s76
      %s78 = sshll.u32 %s3, 4
      %s79 = int_to_ptr.hbm [resolvable:$true] %s78
      %81 = dma.vmem_to_hbm [thread:$0]  %s77, 32, %s79, [#allocation4]
    $region25: #{_lambda_.23} parent=1 // pred_fallthru
      _
    // Predicated region
    $region26: #{_lambda_.23} parent=1 // pred_check
      _
    $region27: #{_lambda_.23} parent=1 // pred_check_branch
      %83 = sbr.rel (0) target = $region29
    $region28: #{_lambda_.23} parent=1 // pred_region
      %85 = dma.done [#allocation4], 32
    $region29: #{_lambda_.23} parent=1 // pred_fallthru
      _
    %86 = vsyncpa [#allocation4], 1

// kernel: _lambda_.17
$region0: #{_lambda_.17}
  #allocation0 [shape = 'u32[]', space=smem, size = 0x4, offset = 0x4, fixed_abs, tag = 'smem constant byte address 0x4 - core index']
  #allocation1 [shape = 'u32[72,128]{1,0:T(1,128)}', space=vmem, size = 0x9000, scoped, tag = 'internal scratch']
  #allocation2 [shape = 'f32[16,32]{1,0:T(8,128)}', space=vmem, size = 0x2000, scoped, tag = 'scratch operand']
  %s0 = inlined_call_operand.vmem [shape: bf16[16,64], index: 0, kind: input, shape index: {}]
  %s1 = inlined_call_operand.vmem [shape: bf16[64,32], index: 1, kind: input, shape index: {}]
  %s2 = inlined_call_operand.vmem [shape: f32[1,32], index: 2, kind: input, shape index: {}, may-alias: {2,5}]
  %s3 = inlined_call_operand.vmem [shape: f32[16,32], index: 3, kind: input, shape index: {}]
  %s4 = inlined_call_operand.vmem [shape: f32[1,32], index: 4, kind: input, shape index: {}]
  %s5 = inlined_call_operand.vmem [shape: f32[1,32], index: 5, kind: input, shape index: {}, may-alias: {2,5}]
  %s6 = inlined_call_operand.vmem [shape: f32[16,32], index: 6, kind: output, shape index: {}]
  %s7 = sld [smem:[#allocation0]]
  $region42: #{_lambda_.17} parent=0
    _
  %s9 = ssub.s32 1, %s7
  %s10 = scalar_select 0, %s9, %s7
  // Predicated region
  $region2: #{_lambda_.17} parent=0 // pred_check
    _
  $region3: #{_lambda_.17} parent=0 // pred_check_branch
    %12 = sbr.rel (0) target = $region5
  $region4: #{_lambda_.17} parent=0 // pred_region
    _
  $region5: #{_lambda_.17} parent=0 // pred_fallthru
    _
  // Predicated region
  $region6: #{_lambda_.17} parent=0 // pred_check
    _
  $region7: #{_lambda_.17} parent=0 // pred_check_branch
    %14 = sbr.rel (0) target = $region9
  $region8: #{_lambda_.17} parent=0 // pred_region
    _
  $region9: #{_lambda_.17} parent=0 // pred_fallthru
    _
  // Predicated region
  $region10: #{_lambda_.17} parent=0 // pred_check
    _
  $region11: #{_lambda_.17} parent=0 // pred_check_branch
    %16 = sbr.rel (0) target = $region13
  $region12: #{_lambda_.17} parent=0 // pred_region
    _
  $region13: #{_lambda_.17} parent=0 // pred_fallthru
    _
  // Predicated region
  $region14: #{_lambda_.17} parent=0 // pred_check
    _
  $region15: #{_lambda_.17} parent=0 // pred_check_branch
    %18 = sbr.rel (0) target = $region17
  $region16: #{_lambda_.17} parent=0 // pred_region
    _
  $region17: #{_lambda_.17} parent=0 // pred_fallthru
    _
  // Predicated region
  $region18: #{_lambda_.17} parent=0 // pred_check
    _
  $region19: #{_lambda_.17} parent=0 // pred_check_branch
    %20 = sbr.rel (0) target = $region21
  $region20: #{_lambda_.17} parent=0 // pred_region
    _
  $region21: #{_lambda_.17} parent=0 // pred_fallthru
    _
  // Predicated region
  $region22: #{_lambda_.17} parent=0 // pred_check
    _
  $region23: #{_lambda_.17} parent=0 // pred_check_branch
    %22 = sbr.rel (0) target = $region25
  $region24: #{_lambda_.17} parent=0 // pred_region
    _
  $region25: #{_lambda_.17} parent=0 // pred_fallthru
    _
  %p24 = scmp.eq.s32.totalorder 0, 0
  // Predicated region
  $region26: #{_lambda_.17} parent=0 // pred_check
    %p25 = pneg %p24
  $region27: #{_lambda_.17} parent=0 // pred_check_branch
    %27 = sbr.rel (%p25) target = $region29
  $region28: #{_lambda_.17} parent=0 // pred_region
    %vm28 = vcmask 261120
    %29 = vst.msk [vmem:[#allocation2] sm:$0xff] %vm28, 0.0
    %30 = vst.msk [vmem:[#allocation2 + $0x8] sm:$0xff] %vm28, 0.0
  $region29: #{_lambda_.17} parent=0 // pred_fallthru
    _
  %v31 = vld [vmem:[#allocation2] sm:$0xff]
  %v32 = vld [vmem:[#allocation2 + $0x8] sm:$0xff]
  %v33 = vld [vmem:[%s0] sm:$0xf]
  %v34 = vld [vmem:[%s0 + $0x4] sm:$0xf]
  %v35 = vld [vmem:[%s1] sm:$0xf]
  %v36 = vld [vmem:[%s1 + $0x4] sm:$0xf]
  %v37 = vld [vmem:[%s1 + $0x8] sm:$0xf]
  %v38 = vld [vmem:[%s1 + $0xc] sm:$0xf]
  %v39 = vld [vmem:[%s1 + $0x10] sm:$0xf]
  %v40 = vld [vmem:[%s1 + $0x14] sm:$0xf]
  %v41 = vld [vmem:[%s1 + $0x18] sm:$0xf]
  %v42 = vld [vmem:[%s1 + $0x1c] sm:$0xf]
  %v45 = vunpack.c.l.b16 %v33
  %v46 = vunpack.c.l.b16 %v34
  %v47 = vpack.c.b16 %v46, %v45
  %v56 = vunpack.c.l.b16 %v35
  %v57 = vunpack.c.l.b16 %v36
  %v58 = vunpack.c.l.b16 %v37
  %v59 = vunpack.c.l.b16 %v38
  %v60 = vunpack.c.l.b16 %v39
  %v61 = vunpack.c.l.b16 %v40
  %v62 = vunpack.c.l.b16 %v41
  %v63 = vunpack.c.l.b16 %v42
  %v64 = vpack.c.b16 %v57, %v56
  %v65 = vpack.c.b16 %v59, %v58
  %v66 = vpack.c.b16 %v61, %v60
  %v67 = vpack.c.b16 %v63, %v62
  %vm72 = vcmask 523264
  %v74 = vsel %vm72, %v47, 0
  %76 = vmatpush.bf16.msra.mxu0 0
  %77 = vmatpush.bf16.msra.mxu0 0
  %78 = vmatpush.bf16.msra.mxu0 0
  %79 = vmatpush.bf16.msra.mxu0 0
  %80 = vmatpush.bf16.msra.mxu0 %v67
  %81 = vmatpush.bf16.msra.mxu0 %v66
  %82 = vmatpush.bf16.msra.mxu0 %v65
  %83 = vmatpush.bf16.msra.mxu0 %v64
  %84 = vmatmul.bf16.gmra.mxu0 %v74
  %v85 = vpop.f32.mrf.mxu0
  %v86 = vadd.f32 0.0, %v85
  %v87 = vpop.f32.mrf.mxu0
  %v88 = vadd.f32 0.0, %v87
  %89 = vdwg.mxu0
  %v90 = vadd.f32 %v31, %v86
  %v91 = vadd.f32 %v32, %v88
  %vm92 = vcmask 261120
  %93 = vst.msk [vmem:[#allocation2] sm:$0xff] %vm92, %v90
  %94 = vst.msk [vmem:[#allocation2 + $0x8] sm:$0xff] %vm92, %v91
  // Predicated region
  $region30: #{_lambda_.17} parent=0 // pred_check
    %p95 = pneg %p24
  $region31: #{_lambda_.17} parent=0 // pred_check_branch
    %97 = sbr.rel (%p95) target = $region33
  $region32: #{_lambda_.17} parent=0 // pred_region
    %v98 = vld [vmem:[#allocation2] sm:$0xff]
    %v99 = vld [vmem:[#allocation2 + $0x8] sm:$0xff]
    %v100 = vld [vmem:[%s2] sm:$0x1]
    %v102 = vperm.slane %v100, 0
    %v104 = vadd.f32 %v98, %v102
    %v105 = vadd.f32 %v99, %v102
    %v106 = vld [vmem:[%s3] sm:$0xff]
    %v107 = vld [vmem:[%s3 + $0x8] sm:$0xff]
    %v108 = vadd.f32 %v104, %v106
    %v109 = vadd.f32 %v105, %v107
    %v110 = vsel %vm92, %v108, 0.0
    %111 = vadd.xlane.f32.xlu0 %v110
    %v112 = vpop.xlane.xlu0 %111
    %v113 = vsel %vm92, %v109, 0.0
    %114 = vadd.xlane.f32.xlu0 %v113
    %v115 = vpop.xlane.xlu0 %114
    %v116 = vrcp.pop 32.0
    %v117 = vmul.f32 32.0, %v116
    %v118 = vsub.f32 1.0, %v117
    %v119 = vmul.f32 %v116, %v118
    %v120 = vadd.f32 %v116, %v119
    %vm121 = vweird.f32 %v116
    %v122 = vsel %vm121, %v116, %v120
    %v123 = vmul.f32 %v112, %v122
    %v124 = vmul.f32 %v115, %v122
    %v125 = vsub.f32 %v108, %v123
    %v126 = vsub.f32 %v109, %v124
    %v127 = vmul.f32 %v125, %v125
    %v128 = vmul.f32 %v126, %v126
    %v129 = vsel %vm92, %v127, 0.0
    %130 = vadd.xlane.f32.xlu0 %v129
    %v131 = vpop.xlane.xlu0 %130
    %v132 = vsel %vm92, %v128, 0.0
    %133 = vadd.xlane.f32.xlu0 %v132
    %v134 = vpop.xlane.xlu0 %133
    %v135 = vmul.f32 %v131, %v122
    %v136 = vmul.f32 %v134, %v122
    %v137 = vadd.f32 %v135, 1e-12
    %v138 = vadd.f32 %v136, 1e-12
    %v139 = vrsqrt.pop %v137
    %v140 = vmul.f32 %v139, %v137
    %v141 = vmul.f32 %v140, %v139
    %v142 = vmul.f32 0.5, %v141
    %v143 = vsub.f32 1.5, %v142
    %v144 = vmul.f32 %v139, %v143
    %vm145 = vweird.f32 %v137
    %vm146 = vweird.f32 %v139
    %vm147 = vmor %vm145, %vm146
    %v148 = vsel %vm147, %v139, %v144
    %v149 = vrsqrt.pop %v138
    %v150 = vmul.f32 %v149, %v138
    %v151 = vmul.f32 %v150, %v149
    %v152 = vmul.f32 0.5, %v151
    %v153 = vsub.f32 1.5, %v152
    %v154 = vmul.f32 %v149, %v153
    %vm155 = vweird.f32 %v138
    %vm156 = vweird.f32 %v149
    %vm157 = vmor %vm155, %vm156
    %v158 = vsel %vm157, %v149, %v154
    %v159 = vmul.f32 %v125, %v148
    %v160 = vmul.f32 %v126, %v158
    %v161 = vld [vmem:[%s4] sm:$0x1]
    %v163 = vperm.slane %v161, 0
    %v165 = vmul.f32 %v159, %v163
    %v166 = vmul.f32 %v160, %v163
    %v167 = vld [vmem:[%s5] sm:$0x1]
    %v169 = vperm.slane %v167, 0
    %v171 = vadd.f32 %v165, %v169
    %v172 = vadd.f32 %v166, %v169
    %173 = vst.msk [vmem:[%s6] sm:$0xff] %vm92, %v171
    %174 = vst.msk [vmem:[%s6 + $0x8] sm:$0xff] %vm92, %v172
  $region33: #{_lambda_.17} parent=0 // pred_fallthru
    _
  // Predicated region
  $region34: #{_lambda_.17} parent=0 // pred_check
    _
  $region35: #{_lambda_.17} parent=0 // pred_check_branch
    %176 = sbr.rel (0) target = $region37
  $region36: #{_lambda_.17} parent=0 // pred_region
    _
  $region37: #{_lambda_.17} parent=0 // pred_fallthru
    _
  // Predicated region
  $region38: #{_lambda_.17} parent=0 // pred_check
    _
  $region39: #{_lambda_.17} parent=0 // pred_check_branch
    %178 = sbr.rel (0) target = $region41
  $region40: #{_lambda_.17} parent=0 // pred_region
    _
  $region41: #{_lambda_.17} parent=0 // pred_fallthru
    _

</llo_original>
